<compile_context>
chip_gen: v5e
topology: v5e:2x2
jax: 0.10.0
libtpu: 0.0.40
codegen_flags: <defaults>
</compile_context>

<pallas_src>
import functools

import jax
import jax.numpy as jnp
from jax.experimental import pallas as pl
from jax.experimental.pallas import tpu as pltpu


# ---------------------------------------------------------------------------
# In-kernel building blocks
# ---------------------------------------------------------------------------

def _encoder_body(patchesT_ref, convw_ref, convb_ref, redw_ref, redb_ref,
                  msg_ref, linwr_ref, linwm_ref, linb_ref, feat_scr,
                  *, B, S, Cout):
    """Conv2d(k3,s2,p1)+ReLU, Flatten+Linear, concat(message)+Linear — all in VMEM."""
    # Conv as a single lane-dense bf16 matmul: (Cout, K) @ (K, B*S) -> (Cout, B*S) f32.
    featT = jnp.dot(convw_ref[...], patchesT_ref[...],
                    preferred_element_type=jnp.float32) + convb_ref[...]
    featT = jnp.maximum(featT, 0.0).astype(jnp.bfloat16)            # ReLU, (Cout, B*S)

    # Re-layout (Cout, B*S) -> (B, Cout*S) via cheap static-slice stores (ld/st slots,
    # not the MXU), so the reduction Linear is ONE dense contraction.  Row order of
    # red_w is the NCHW flatten order c*S + s, so no weight permutation is needed.
    for b in range(B):
        for c in range(Cout):
            feat_scr[b:b + 1, c * S:(c + 1) * S] = featT[c:c + 1, b * S:(b + 1) * S]
    reduced = (jnp.dot(feat_scr[...], redw_ref[...],
                       preferred_element_type=jnp.float32)
               + redb_ref[...])                                      # (B, R) f32

    # concat((reduced, message), dim=1) @ lin_w + lin_b, concat folded into split weights.
    lin = (jnp.dot(reduced.astype(jnp.bfloat16), linwr_ref[...],
                   preferred_element_type=jnp.float32)
           + jnp.dot(msg_ref[...], linwm_ref[...],
                     preferred_element_type=jnp.float32)
           + linb_ref[...])                                          # (B, H) f32
    return lin


def _lstm_step(x_proj, h, c_state, whh_bf16, H):
    """One LSTM step. PyTorch gate order (i, f, g, o); c' = f*c + i*g; h' = o*tanh(c')."""
    gates = x_proj + jnp.dot(h.astype(jnp.bfloat16), whh_bf16,
                             preferred_element_type=jnp.float32)     # (B, 4H) f32
    sg = jax.nn.sigmoid(gates)     # one EUP push over the full 128-lane gate vector
    tg = jnp.tanh(gates)           # one EUP push
    i_g = sg[:, 0:H]
    f_g = sg[:, H:2 * H]
    g_g = tg[:, 2 * H:3 * H]
    o_g = sg[:, 3 * H:4 * H]
    c_new = f_g * c_state + i_g * g_g
    h_new = o_g * jnp.tanh(c_new)
    return h_new, c_new


# ---------------------------------------------------------------------------
# Fused forward kernels (one pallas_call per branch, single invocation each)
# ---------------------------------------------------------------------------

def _train_forward_kernel(patchesT_ref, convw_ref, convb_ref, redw_ref, redb_ref,
                          msg_ref, linwr_ref, linwm_ref, linb_ref,
                          cap_ref, embproj_ref, whh_ref, blstm_ref, fcw_ref, fcb_ref,
                          out_ref, feat_scr, h_scr, *, B, S, Cout, H, T, Vp):
    lin = _encoder_body(patchesT_ref, convw_ref, convb_ref, redw_ref, redb_ref,
                        msg_ref, linwr_ref, linwm_ref, linb_ref, feat_scr,
                        B=B, S=S, Cout=Cout)
    h = lin
    c_state = lin        # reference module: lstm_states = (linear, linear)

    # Embedding lookup + LSTM input projection fused into one precomputed table:
    # xproj[t*B+b] = emb_proj[token] + bias, computed for ALL steps as one matmul.
    token_iota = jax.lax.broadcasted_iota(jnp.int32, (T * B, Vp), 1)
    onehot = (token_iota == cap_ref[...]).astype(jnp.bfloat16)                # (T*B, Vp)
    xproj = (jnp.dot(onehot, embproj_ref[...], preferred_element_type=jnp.float32)
             + blstm_ref[...])                                                # (T*B, 4H)

    whh = whh_ref[...]
    for t in range(T):                                  # static unroll, T <= 7
        h, c_state = _lstm_step(xproj[t * B:(t + 1) * B, :], h, c_state, whh, H)
        h_scr[t * B:(t + 1) * B, :] = h.astype(jnp.bfloat16)   # static-slice store

    # fc hoisted out of the recurrence: one (T*B, H) @ (H, Vp) matmul, single store.
    out_ref[...] = (jnp.dot(h_scr[...], fcw_ref[...],
                            preferred_element_type=jnp.float32) + fcb_ref[...])


def _eval_forward_kernel(patchesT_ref, convw_ref, convb_ref, redw_ref, redb_ref,
                         msg_ref, linwr_ref, linwm_ref, linb_ref,
                         embproj_ref, whh_ref, blstm_ref, fcw_ref, fcb_ref,
                         out_ref, feat_scr, *, B, S, Cout, H, Vp, steps, sos):
    lin = _encoder_body(patchesT_ref, convw_ref, convb_ref, redw_ref, redb_ref,
                        msg_ref, linwr_ref, linwm_ref, linb_ref, feat_scr,
                        B=B, S=S, Cout=Cout)
    h = lin
    c_state = lin

    embproj = embproj_ref[...]             # (Vp, 4H) bf16 (emb @ w_ih, padded rows = 0)
    whh = whh_ref[...]
    bg = blstm_ref[...]
    fcw = fcw_ref[...]
    fcb = fcb_ref[...]

    # <SOS> input projection; all batch rows share the start token (as in torch.full),
    # so a (1, 4H) row broadcasting over the batch is exact.
    x_proj = embproj[sos:sos + 1, :].astype(jnp.float32) + bg

    for t in range(steps):                              # static unroll, 3 greedy steps
        h, c_state = _lstm_step(x_proj, h, c_state, whh, H)
        logits = (jnp.dot(h.astype(jnp.bfloat16), fcw,
                          preferred_element_type=jnp.float32) + fcb)          # (B, Vp)
        out_ref[t * B:(t + 1) * B, :] = logits          # lane-dense static-slice store
        if t + 1 < steps:
            # greedy argmax (first occurrence); padded lanes carry bias -1e30, never win
            lane = jax.lax.broadcasted_iota(jnp.int32, (B, Vp), 1).astype(jnp.float32)
            mx = jnp.max(logits, axis=1, keepdims=True)
            word = jnp.min(jnp.where(logits == mx, lane, float(Vp)),
                           axis=1, keepdims=True)                             # (B, 1)
            onehot = (lane == word).astype(jnp.bfloat16)                      # (B, Vp)
            x_proj = (jnp.dot(onehot, embproj,
                              preferred_element_type=jnp.float32) + bg)       # (B, 4H)


# ---------------------------------------------------------------------------
# Plain-JAX glue: im2col + parameter prep
# ---------------------------------------------------------------------------

def _im2col_T(x_nchw, k=3, stride=2, pad=1):
    """Transposed patch matrix (Cin*k*k, B*OH*OW).

    Row feature order (Cin, kh, kw) matches conv_w.reshape(Cout, Cin*k*k);
    column order is (b, oh, ow), i.e. column index = b*S + s with s = oh*OW + ow."""
    # TODO(synk): im2col patch extraction stays as plain-JAX input glue.
    B, C, Hh, Ww = x_nchw.shape
    OH = (Hh + 2 * pad - k) // stride + 1
    OW = (Ww + 2 * pad - k) // stride + 1
    xp = jnp.pad(x_nchw, ((0, 0), (0, 0), (pad, pad), (pad, pad)))
    cols = []
    for kh in range(k):
        for kw in range(k):
            patch = jax.lax.slice(
                xp, (0, 0, kh, kw),
                (B, C, kh + stride * (OH - 1) + 1, kw + stride * (OW - 1) + 1),
                (1, 1, stride, stride))                  # (B, C, OH, OW)
            cols.append(patch)
    patches = jnp.stack(cols, axis=2)                    # (B, C, k*k, OH, OW)
    patches = patches.transpose(1, 2, 0, 3, 4)           # (C, k*k, B, OH, OW)
    return patches.reshape(C * k * k, B * OH * OW), OH, OW


def prepare_params(params, vocab_pad=128):
    """One-time weight re-layout: bf16 MXU operands, padded lane-dense vocab,
    embedding fused with the LSTM input projection, concat folded into split weights."""
    conv_w = params["conv_w"]                       # (Cout, Cin, 3, 3)
    Cout = conv_w.shape[0]
    red_w = params["red_w"]                         # (Cout*S, R), NCHW-flatten row order
    R = red_w.shape[1]
    H = params["w_hh"].shape[0]
    V, _E = params["emb"].shape
    Vp = max(vocab_pad, V)

    emb_proj = params["emb"] @ params["w_ih"]                       # (V, 4H) f32
    emb_proj = jnp.zeros((Vp, 4 * H), jnp.float32).at[:V, :].set(emb_proj)

    fc_w = jnp.zeros((H, Vp), jnp.float32).at[:, :V].set(params["fc_w"])
    # padded bias lanes get -1e30 so the eval argmax never selects them
    fc_b = jnp.full((1, Vp), -1e30, jnp.float32).at[0, :V].set(params["fc_b"])

    bf = lambda a: a.astype(jnp.bfloat16)
    return {
        "conv_wT": bf(conv_w.reshape(Cout, -1)),    # (Cout, Cin*9) bf16
        "conv_b": params["conv_b"].reshape(Cout, 1),
        "red_w": bf(red_w),                         # (Cout*S, R) bf16, rows = c*S + s
        "red_b": params["red_b"].reshape(1, R),
        "lin_w_r": bf(params["lin_w"][:R, :]),      # concat folded into split weights
        "lin_w_m": bf(params["lin_w"][R:, :]),
        "lin_b": params["lin_b"].reshape(1, H),
        "emb_proj": bf(emb_proj),                   # (Vp, 4H) bf16  (emb @ w_ih)
        "w_hh": bf(params["w_hh"]),                 # (H, 4H) bf16
        "b_lstm": params["b_lstm"].reshape(1, 4 * H),
        "fc_w": bf(fc_w),                           # (H, Vp) bf16
        "fc_b": fc_b,                               # (1, Vp) f32
    }


# ---------------------------------------------------------------------------
# Forward (train_mode is STATIC: no device->host sync, two jitted variants)
# ---------------------------------------------------------------------------

@functools.partial(jax.jit,
                   static_argnames=("train_mode", "sos", "vocab", "eval_steps"))
def caption_generator_receiver_forward(prep, message, x, captions, *,
                                       train_mode, sos, vocab=24, eval_steps=3):
    """Mirrors CaptionGeneratorReceiver.forward(message, x, aux_input)."""
    B = x.shape[0]
    patchesT, OH, OW = _im2col_T(x)
    patchesT = patchesT.astype(jnp.bfloat16)
    msg = message.astype(jnp.bfloat16)
    S = OH * OW
    Cout = prep["conv_wT"].shape[0]
    H = prep["w_hh"].shape[0]
    Vp = prep["fc_w"].shape[1]                      # padded (lane-dense) vocab

    common = (patchesT, prep["conv_wT"], prep["conv_b"], prep["red_w"], prep["red_b"],
              msg, prep["lin_w_r"], prep["lin_w_m"], prep["lin_b"])
    vmem_spec = pl.BlockSpec(memory_space=pltpu.MemorySpace.VMEM)

    if train_mode:
        cap_in = captions[:, :-1]                                    # (B, T)
        T = cap_in.shape[1]
        cap_flat = cap_in.T.reshape(T * B, 1).astype(jnp.int32)      # row order (t, b)
        args = common + (cap_flat, prep["emb_proj"], prep["w_hh"], prep["b_lstm"],
                         prep["fc_w"], prep["fc_b"])
        kernel = functools.partial(_train_forward_kernel,
                                   B=B, S=S, Cout=Cout, H=H, T=T, Vp=Vp)
        out = pl.pallas_call(
            kernel,
            out_shape=jax.ShapeDtypeStruct((T * B, Vp), jnp.float32),
            in_specs=[vmem_spec] * len(args),
            out_specs=vmem_spec,
            scratch_shapes=[pltpu.VMEM((B, Cout * S), jnp.bfloat16),   # re-laid conv feat
                            pltpu.VMEM((T * B, H), jnp.bfloat16)],     # hidden states
        )(*args)
        # (T*B, Vp) -> (B, V, T)  == predicted.permute(0, 2, 1)
        return out.reshape(T, B, Vp)[:, :, :vocab].transpose(1, 2, 0)
    else:
        args = common + (prep["emb_proj"], prep["w_hh"], prep["b_lstm"],
                         prep["fc_w"], prep["fc_b"])
        kernel = functools.partial(_eval_forward_kernel,
                                   B=B, S=S, Cout=Cout, H=H, Vp=Vp,
                                   steps=eval_steps, sos=sos)
        out = pl.pallas_call(
            kernel,
            out_shape=jax.ShapeDtypeStruct((eval_steps * B, Vp), jnp.float32),
            in_specs=[vmem_spec] * len(args),
            out_specs=vmem_spec,
            scratch_shapes=[pltpu.VMEM((B, Cout * S), jnp.bfloat16)],
        )(*args)
        # (steps*B, Vp) -> (B, V, steps)  == torch.stack(predicted).permute(1, 2, 0)
        return out.reshape(eval_steps, B, Vp)[:, :, :vocab].transpose(1, 2, 0)


# ---------------------------------------------------------------------------
# Deterministic parameter init + example run
# ---------------------------------------------------------------------------

def make_params(key):
    Cin, Cenc = 4, 8
    R = 32            # receiver_image_embedding
    Hh = 32           # caption_decoder.decoder_out == LSTM hidden
    E = 16            # embedding dim
    V = 24            # vocab
    Mdim = 16         # message dim
    flat_in = Cenc * 8 * 8

    ks = jax.random.split(key, 11)

    def init(k, shape, scale=0.1):
        return scale * jax.random.normal(k, shape, jnp.float32)

    return {
        "conv_w": init(ks[0], (Cenc, Cin, 3, 3)),
        "conv_b": init(ks[1], (Cenc,)),
        "red_w": init(ks[2], (flat_in, R)),        # stored (in, out), NCHW-flatten rows
        "red_b": init(ks[3], (R,)),
        "lin_w": init(ks[4], (R + Mdim, Hh)),
        "lin_b": init(ks[5], (Hh,)),
        "emb": init(ks[6], (V, E)),
        "w_ih": init(ks[7], (E, 4 * Hh)),          # transposed PyTorch weight_ih_l0
        "w_hh": init(ks[8], (Hh, 4 * Hh)),         # transposed PyTorch weight_hh_l0
        "b_lstm": init(ks[9], (4 * Hh,)),          # b_ih + b_hh combined
        "fc_w": init(ks[10], (Hh, V)),
        "fc_b": jnp.zeros((V,), jnp.float32),
        "encoded_sos": 1,
    }


if __name__ == "__main__":
    key = jax.random.PRNGKey(0)
    kp, kx, km, kc = jax.random.split(key, 4)

    params = make_params(kp)
    sos = int(params["encoded_sos"])
    prep = prepare_params(params)

    B = 2
    V = 24
    x = jax.random.normal(kx, (B, 4, 16, 16), jnp.float32)        # NCHW image
    message = jax.random.normal(km, (B, 16), jnp.float32)
    captions = jax.random.randint(kc, (B, 8), 0, V, dtype=jnp.int32)

    # train-mode branch (teacher forcing) — single fused Pallas kernel
    out_train = caption_generator_receiver_forward(
        prep, message, x, captions, train_mode=True, sos=sos, vocab=V)
    # eval branch (3-step greedy decode) — single fused Pallas kernel
    out_eval = caption_generator_receiver_forward(
        prep, message, x, captions, train_mode=False, sos=sos, vocab=V)

    jax.block_until_ready(out_train)
    jax.block_until_ready(out_eval)

    assert out_train.shape == (B, V, 7), out_train.shape   # (batch, vocab, seq-1)
    assert out_eval.shape == (B, V, 3), out_eval.shape     # (batch, vocab, 3)
    assert jnp.isfinite(out_train).all() and jnp.isfinite(out_eval).all()

    print("KERNEL_OK")
</pallas_src>

<mosaic_0001>
module attributes {stable_mosaic.version = 11 : i64} {
  func.func @_train_forward_kernel(%arg0: memref<36x128xbf16, #tpu.memory_space<vmem>>, %arg1: memref<8x36xbf16, #tpu.memory_space<vmem>>, %arg2: memref<8x1xf32, #tpu.memory_space<vmem>>, %arg3: memref<512x32xbf16, #tpu.memory_space<vmem>>, %arg4: memref<1x32xf32, #tpu.memory_space<vmem>>, %arg5: memref<2x16xbf16, #tpu.memory_space<vmem>>, %arg6: memref<32x32xbf16, #tpu.memory_space<vmem>>, %arg7: memref<16x32xbf16, #tpu.memory_space<vmem>>, %arg8: memref<1x32xf32, #tpu.memory_space<vmem>>, %arg9: memref<14x1xi32, #tpu.memory_space<vmem>>, %arg10: memref<128x128xbf16, #tpu.memory_space<vmem>>, %arg11: memref<32x128xbf16, #tpu.memory_space<vmem>>, %arg12: memref<1x128xf32, #tpu.memory_space<vmem>>, %arg13: memref<32x128xbf16, #tpu.memory_space<vmem>>, %arg14: memref<1x128xf32, #tpu.memory_space<vmem>>, %arg15: memref<14x128xf32, #tpu.memory_space<vmem>>, %arg16: memref<2x512xbf16, #tpu.memory_space<vmem>>, %arg17: memref<14x32xbf16, #tpu.memory_space<vmem>>) attributes {dimension_semantics = [], scalar_prefetch = 0 : i64, scratch_operands = 2 : i64, tpu.core_type = #tpu.core_type<tc>} {
    %c0 = arith.constant 0 : index
    %c0_0 = arith.constant 0 : index
    %0 = vector.load %arg1[%c0, %c0_0] : memref<8x36xbf16, #tpu.memory_space<vmem>>, vector<8x36xbf16>
    %c0_1 = arith.constant 0 : index
    %c0_2 = arith.constant 0 : index
    %1 = vector.load %arg0[%c0_1, %c0_2] : memref<36x128xbf16, #tpu.memory_space<vmem>>, vector<36x128xbf16>
    %cst = arith.constant dense<0.000000e+00> : vector<8x128xf32>
    %2 = tpu.matmul %0, %1, %cst {dimension_numbers = #tpu.dot_dimension_numbers<[1], [0], [0], [1], [0, 0, 1, 1], [], []>} : vector<8x36xbf16>, vector<36x128xbf16>, vector<8x128xf32> -> vector<8x128xf32>
    %c0_3 = arith.constant 0 : index
    %c0_4 = arith.constant 0 : index
    %3 = vector.load %arg2[%c0_3, %c0_4] : memref<8x1xf32, #tpu.memory_space<vmem>>, vector<8x1xf32>
    %4 = vector.broadcast %3 : vector<8x1xf32> to vector<8x128xf32>
    %5 = arith.addf %2, %4 : vector<8x128xf32>
    %cst_5 = arith.constant 0.000000e+00 : f32
    %6 = vector.broadcast %cst_5 : f32 to vector<8x128xf32>
    %7 = arith.maximumf %5, %6 : vector<8x128xf32>
    %8 = arith.truncf %7 : vector<8x128xf32> to vector<8x128xbf16>
    %9 = vector.extract_strided_slice %8 {offsets = [0, 0], sizes = [1, 64], strides = [1, 1]} : vector<8x128xbf16> to vector<1x64xbf16>
    %c0_6 = arith.constant 0 : index
    %c0_7 = arith.constant 0 : index
    %10 = vector.load %arg16[%c0_6, %c0_7] : memref<2x512xbf16, #tpu.memory_space<vmem>>, vector<1x64xbf16>
    tpu.vector_store %arg16[%c0_6, %c0_7], %9 {strides = array<i32>} : memref<2x512xbf16, #tpu.memory_space<vmem>>, vector<1x64xbf16>,
    %11 = vector.extract_strided_slice %8 {offsets = [1, 0], sizes = [1, 64], strides = [1, 1]} : vector<8x128xbf16> to vector<1x64xbf16>
    %c0_8 = arith.constant 0 : index
    %c64 = arith.constant 64 : index
    %12 = vector.load %arg16[%c0_8, %c64] : memref<2x512xbf16, #tpu.memory_space<vmem>>, vector<1x64xbf16>
    tpu.vector_store %arg16[%c0_8, %c64], %11 {strides = array<i32>} : memref<2x512xbf16, #tpu.memory_space<vmem>>, vector<1x64xbf16>,
    %13 = vector.extract_strided_slice %8 {offsets = [2, 0], sizes = [1, 64], strides = [1, 1]} : vector<8x128xbf16> to vector<1x64xbf16>
    %c0_9 = arith.constant 0 : index
    %c128 = arith.constant 128 : index
    %14 = vector.load %arg16[%c0_9, %c128] : memref<2x512xbf16, #tpu.memory_space<vmem>>, vector<1x64xbf16>
    tpu.vector_store %arg16[%c0_9, %c128], %13 {strides = array<i32>} : memref<2x512xbf16, #tpu.memory_space<vmem>>, vector<1x64xbf16>,
    %15 = vector.extract_strided_slice %8 {offsets = [3, 0], sizes = [1, 64], strides = [1, 1]} : vector<8x128xbf16> to vector<1x64xbf16>
    %c0_10 = arith.constant 0 : index
    %c192 = arith.constant 192 : index
    %16 = vector.load %arg16[%c0_10, %c192] : memref<2x512xbf16, #tpu.memory_space<vmem>>, vector<1x64xbf16>
    tpu.vector_store %arg16[%c0_10, %c192], %15 {strides = array<i32>} : memref<2x512xbf16, #tpu.memory_space<vmem>>, vector<1x64xbf16>,
    %17 = vector.extract_strided_slice %8 {offsets = [4, 0], sizes = [1, 64], strides = [1, 1]} : vector<8x128xbf16> to vector<1x64xbf16>
    %c0_11 = arith.constant 0 : index
    %c256 = arith.constant 256 : index
    %18 = vector.load %arg16[%c0_11, %c256] : memref<2x512xbf16, #tpu.memory_space<vmem>>, vector<1x64xbf16>
    tpu.vector_store %arg16[%c0_11, %c256], %17 {strides = array<i32>} : memref<2x512xbf16, #tpu.memory_space<vmem>>, vector<1x64xbf16>,
    %19 = vector.extract_strided_slice %8 {offsets = [5, 0], sizes = [1, 64], strides = [1, 1]} : vector<8x128xbf16> to vector<1x64xbf16>
    %c0_12 = arith.constant 0 : index
    %c320 = arith.constant 320 : index
    %20 = vector.load %arg16[%c0_12, %c320] : memref<2x512xbf16, #tpu.memory_space<vmem>>, vector<1x64xbf16>
    tpu.vector_store %arg16[%c0_12, %c320], %19 {strides = array<i32>} : memref<2x512xbf16, #tpu.memory_space<vmem>>, vector<1x64xbf16>,
    %21 = vector.extract_strided_slice %8 {offsets = [6, 0], sizes = [1, 64], strides = [1, 1]} : vector<8x128xbf16> to vector<1x64xbf16>
    %c0_13 = arith.constant 0 : index
    %c384 = arith.constant 384 : index
    %22 = vector.load %arg16[%c0_13, %c384] : memref<2x512xbf16, #tpu.memory_space<vmem>>, vector<1x64xbf16>
    tpu.vector_store %arg16[%c0_13, %c384], %21 {strides = array<i32>} : memref<2x512xbf16, #tpu.memory_space<vmem>>, vector<1x64xbf16>,
    %23 = vector.extract_strided_slice %8 {offsets = [7, 0], sizes = [1, 64], strides = [1, 1]} : vector<8x128xbf16> to vector<1x64xbf16>
    %c0_14 = arith.constant 0 : index
    %c448 = arith.constant 448 : index
    %24 = vector.load %arg16[%c0_14, %c448] : memref<2x512xbf16, #tpu.memory_space<vmem>>, vector<1x64xbf16>
    tpu.vector_store %arg16[%c0_14, %c448], %23 {strides = array<i32>} : memref<2x512xbf16, #tpu.memory_space<vmem>>, vector<1x64xbf16>,
    %25 = vector.extract_strided_slice %8 {offsets = [0, 64], sizes = [1, 64], strides = [1, 1]} : vector<8x128xbf16> to vector<1x64xbf16>
    %c1 = arith.constant 1 : index
    %c0_15 = arith.constant 0 : index
    %26 = vector.load %arg16[%c1, %c0_15] : memref<2x512xbf16, #tpu.memory_space<vmem>>, vector<1x64xbf16>
    tpu.vector_store %arg16[%c1, %c0_15], %25 {strides = array<i32>} : memref<2x512xbf16, #tpu.memory_space<vmem>>, vector<1x64xbf16>,
    %27 = vector.extract_strided_slice %8 {offsets = [1, 64], sizes = [1, 64], strides = [1, 1]} : vector<8x128xbf16> to vector<1x64xbf16>
    %c1_16 = arith.constant 1 : index
    %c64_17 = arith.constant 64 : index
    %28 = vector.load %arg16[%c1_16, %c64_17] : memref<2x512xbf16, #tpu.memory_space<vmem>>, vector<1x64xbf16>
    tpu.vector_store %arg16[%c1_16, %c64_17], %27 {strides = array<i32>} : memref<2x512xbf16, #tpu.memory_space<vmem>>, vector<1x64xbf16>,
    %29 = vector.extract_strided_slice %8 {offsets = [2, 64], sizes = [1, 64], strides = [1, 1]} : vector<8x128xbf16> to vector<1x64xbf16>
    %c1_18 = arith.constant 1 : index
    %c128_19 = arith.constant 128 : index
    %30 = vector.load %arg16[%c1_18, %c128_19] : memref<2x512xbf16, #tpu.memory_space<vmem>>, vector<1x64xbf16>
    tpu.vector_store %arg16[%c1_18, %c128_19], %29 {strides = array<i32>} : memref<2x512xbf16, #tpu.memory_space<vmem>>, vector<1x64xbf16>,
    %31 = vector.extract_strided_slice %8 {offsets = [3, 64], sizes = [1, 64], strides = [1, 1]} : vector<8x128xbf16> to vector<1x64xbf16>
    %c1_20 = arith.constant 1 : index
    %c192_21 = arith.constant 192 : index
    %32 = vector.load %arg16[%c1_20, %c192_21] : memref<2x512xbf16, #tpu.memory_space<vmem>>, vector<1x64xbf16>
    tpu.vector_store %arg16[%c1_20, %c192_21], %31 {strides = array<i32>} : memref<2x512xbf16, #tpu.memory_space<vmem>>, vector<1x64xbf16>,
    %33 = vector.extract_strided_slice %8 {offsets = [4, 64], sizes = [1, 64], strides = [1, 1]} : vector<8x128xbf16> to vector<1x64xbf16>
    %c1_22 = arith.constant 1 : index
    %c256_23 = arith.constant 256 : index
    %34 = vector.load %arg16[%c1_22, %c256_23] : memref<2x512xbf16, #tpu.memory_space<vmem>>, vector<1x64xbf16>
    tpu.vector_store %arg16[%c1_22, %c256_23], %33 {strides = array<i32>} : memref<2x512xbf16, #tpu.memory_space<vmem>>, vector<1x64xbf16>,
    %35 = vector.extract_strided_slice %8 {offsets = [5, 64], sizes = [1, 64], strides = [1, 1]} : vector<8x128xbf16> to vector<1x64xbf16>
    %c1_24 = arith.constant 1 : index
    %c320_25 = arith.constant 320 : index
    %36 = vector.load %arg16[%c1_24, %c320_25] : memref<2x512xbf16, #tpu.memory_space<vmem>>, vector<1x64xbf16>
    tpu.vector_store %arg16[%c1_24, %c320_25], %35 {strides = array<i32>} : memref<2x512xbf16, #tpu.memory_space<vmem>>, vector<1x64xbf16>,
    %37 = vector.extract_strided_slice %8 {offsets = [6, 64], sizes = [1, 64], strides = [1, 1]} : vector<8x128xbf16> to vector<1x64xbf16>
    %c1_26 = arith.constant 1 : index
    %c384_27 = arith.constant 384 : index
    %38 = vector.load %arg16[%c1_26, %c384_27] : memref<2x512xbf16, #tpu.memory_space<vmem>>, vector<1x64xbf16>
    tpu.vector_store %arg16[%c1_26, %c384_27], %37 {strides = array<i32>} : memref<2x512xbf16, #tpu.memory_space<vmem>>, vector<1x64xbf16>,
    %39 = vector.extract_strided_slice %8 {offsets = [7, 64], sizes = [1, 64], strides = [1, 1]} : vector<8x128xbf16> to vector<1x64xbf16>
    %c1_28 = arith.constant 1 : index
    %c448_29 = arith.constant 448 : index
    %40 = vector.load %arg16[%c1_28, %c448_29] : memref<2x512xbf16, #tpu.memory_space<vmem>>, vector<1x64xbf16>
    tpu.vector_store %arg16[%c1_28, %c448_29], %39 {strides = array<i32>} : memref<2x512xbf16, #tpu.memory_space<vmem>>, vector<1x64xbf16>,
    %c0_30 = arith.constant 0 : index
    %c0_31 = arith.constant 0 : index
    %41 = vector.load %arg16[%c0_30, %c0_31] : memref<2x512xbf16, #tpu.memory_space<vmem>>, vector<2x512xbf16>
    %c0_32 = arith.constant 0 : index
    %c0_33 = arith.constant 0 : index
    %42 = vector.load %arg3[%c0_32, %c0_33] : memref<512x32xbf16, #tpu.memory_space<vmem>>, vector<512x32xbf16>
    %cst_34 = arith.constant dense<0.000000e+00> : vector<2x32xf32>
    %43 = tpu.matmul %41, %42, %cst_34 {dimension_numbers = #tpu.dot_dimension_numbers<[1], [0], [0], [1], [0, 0, 1, 1], [], []>} : vector<2x512xbf16>, vector<512x32xbf16>, vector<2x32xf32> -> vector<2x32xf32>
    %c0_35 = arith.constant 0 : index
    %c0_36 = arith.constant 0 : index
    %44 = vector.load %arg4[%c0_35, %c0_36] : memref<1x32xf32, #tpu.memory_space<vmem>>, vector<1x32xf32>
    %45 = vector.broadcast %44 : vector<1x32xf32> to vector<2x32xf32>
    %46 = arith.addf %43, %45 : vector<2x32xf32>
    %47 = arith.truncf %46 : vector<2x32xf32> to vector<2x32xbf16>
    %c0_37 = arith.constant 0 : index
    %c0_38 = arith.constant 0 : index
    %48 = vector.load %arg6[%c0_37, %c0_38] : memref<32x32xbf16, #tpu.memory_space<vmem>>, vector<32x32xbf16>
    %cst_39 = arith.constant dense<0.000000e+00> : vector<2x32xf32>
    %49 = tpu.matmul %47, %48, %cst_39 {dimension_numbers = #tpu.dot_dimension_numbers<[1], [0], [0], [1], [0, 0, 1, 1], [], []>} : vector<2x32xbf16>, vector<32x32xbf16>, vector<2x32xf32> -> vector<2x32xf32>
    %c0_40 = arith.constant 0 : index
    %c0_41 = arith.constant 0 : index
    %50 = vector.load %arg5[%c0_40, %c0_41] : memref<2x16xbf16, #tpu.memory_space<vmem>>, vector<2x16xbf16>
    %c0_42 = arith.constant 0 : index
    %c0_43 = arith.constant 0 : index
    %51 = vector.load %arg7[%c0_42, %c0_43] : memref<16x32xbf16, #tpu.memory_space<vmem>>, vector<16x32xbf16>
    %cst_44 = arith.constant dense<0.000000e+00> : vector<2x32xf32>
    %52 = tpu.matmul %50, %51, %cst_44 {dimension_numbers = #tpu.dot_dimension_numbers<[1], [0], [0], [1], [0, 0, 1, 1], [], []>} : vector<2x16xbf16>, vector<16x32xbf16>, vector<2x32xf32> -> vector<2x32xf32>
    %53 = arith.addf %49, %52 : vector<2x32xf32>
    %c0_45 = arith.constant 0 : index
    %c0_46 = arith.constant 0 : index
    %54 = vector.load %arg8[%c0_45, %c0_46] : memref<1x32xf32, #tpu.memory_space<vmem>>, vector<1x32xf32>
    %55 = vector.broadcast %54 : vector<1x32xf32> to vector<2x32xf32>
    %56 = arith.addf %53, %55 : vector<2x32xf32>
    %57 = tpu.iota {dimensions = array<i32: 1>} : vector<14x128xi32>
    %c0_47 = arith.constant 0 : index
    %c0_48 = arith.constant 0 : index
    %58 = vector.load %arg9[%c0_47, %c0_48] : memref<14x1xi32, #tpu.memory_space<vmem>>, vector<14x1xi32>
    %59 = vector.broadcast %58 : vector<14x1xi32> to vector<14x128xi32>
    %60 = arith.cmpi eq, %57, %59 : vector<14x128xi32>
    %61 = arith.extui %60 : vector<14x128xi1> to vector<14x128xi32>
    %62 = arith.sitofp %61 : vector<14x128xi32> to vector<14x128xf32>
    %63 = arith.truncf %62 : vector<14x128xf32> to vector<14x128xbf16>
    %c0_49 = arith.constant 0 : index
    %c0_50 = arith.constant 0 : index
    %64 = vector.load %arg10[%c0_49, %c0_50] : memref<128x128xbf16, #tpu.memory_space<vmem>>, vector<128x128xbf16>
    %cst_51 = arith.constant dense<0.000000e+00> : vector<14x128xf32>
    %65 = tpu.matmul %63, %64, %cst_51 {dimension_numbers = #tpu.dot_dimension_numbers<[1], [0], [0], [1], [0, 0, 1, 1], [], []>} : vector<14x128xbf16>, vector<128x128xbf16>, vector<14x128xf32> -> vector<14x128xf32>
    %c0_52 = arith.constant 0 : index
    %c0_53 = arith.constant 0 : index
    %66 = vector.load %arg12[%c0_52, %c0_53] : memref<1x128xf32, #tpu.memory_space<vmem>>, vector<1x128xf32>
    %67 = vector.broadcast %66 : vector<1x128xf32> to vector<14x128xf32>
    %68 = arith.addf %65, %67 : vector<14x128xf32>
    %c0_54 = arith.constant 0 : index
    %c0_55 = arith.constant 0 : index
    %69 = vector.load %arg11[%c0_54, %c0_55] : memref<32x128xbf16, #tpu.memory_space<vmem>>, vector<32x128xbf16>
    %70 = vector.extract_strided_slice %68 {offsets = [0, 0], sizes = [2, 128], strides = [1, 1]} : vector<14x128xf32> to vector<2x128xf32>
    %71 = arith.truncf %56 : vector<2x32xf32> to vector<2x32xbf16>
    %cst_56 = arith.constant dense<0.000000e+00> : vector<2x128xf32>
    %72 = tpu.matmul %71, %69, %cst_56 {dimension_numbers = #tpu.dot_dimension_numbers<[1], [0], [0], [1], [0, 0, 1, 1], [], []>} : vector<2x32xbf16>, vector<32x128xbf16>, vector<2x128xf32> -> vector<2x128xf32>
    %73 = arith.addf %70, %72 : vector<2x128xf32>
    %74 = arith.negf %73 : vector<2x128xf32>
    %75 = math.exp %74 : vector<2x128xf32>
    %cst_57 = arith.constant 1.000000e+00 : f32
    %76 = vector.broadcast %cst_57 : f32 to vector<2x128xf32>
    %77 = arith.addf %76, %75 : vector<2x128xf32>
    %78 = arith.divf %76, %77 : vector<2x128xf32>
    %79 = math.tanh %73 : vector<2x128xf32>
    %80 = vector.extract_strided_slice %78 {offsets = [0, 0], sizes = [2, 32], strides = [1, 1]} : vector<2x128xf32> to vector<2x32xf32>
    %81 = vector.extract_strided_slice %78 {offsets = [0, 32], sizes = [2, 32], strides = [1, 1]} : vector<2x128xf32> to vector<2x32xf32>
    %82 = vector.extract_strided_slice %79 {offsets = [0, 64], sizes = [2, 32], strides = [1, 1]} : vector<2x128xf32> to vector<2x32xf32>
    %83 = vector.extract_strided_slice %78 {offsets = [0, 96], sizes = [2, 32], strides = [1, 1]} : vector<2x128xf32> to vector<2x32xf32>
    %84 = arith.mulf %81, %56 : vector<2x32xf32>
    %85 = arith.mulf %80, %82 : vector<2x32xf32>
    %86 = arith.addf %84, %85 : vector<2x32xf32>
    %87 = math.tanh %86 : vector<2x32xf32>
    %88 = arith.mulf %83, %87 : vector<2x32xf32>
    %89 = arith.truncf %88 : vector<2x32xf32> to vector<2x32xbf16>
    %c0_58 = arith.constant 0 : index
    %c0_59 = arith.constant 0 : index
    %90 = vector.load %arg17[%c0_58, %c0_59] : memref<14x32xbf16, #tpu.memory_space<vmem>>, vector<2x32xbf16>
    tpu.vector_store %arg17[%c0_58, %c0_59], %89 {strides = array<i32>} : memref<14x32xbf16, #tpu.memory_space<vmem>>, vector<2x32xbf16>,
    %91 = vector.extract_strided_slice %68 {offsets = [2, 0], sizes = [2, 128], strides = [1, 1]} : vector<14x128xf32> to vector<2x128xf32>
    %92 = arith.truncf %88 : vector<2x32xf32> to vector<2x32xbf16>
    %cst_60 = arith.constant dense<0.000000e+00> : vector<2x128xf32>
    %93 = tpu.matmul %92, %69, %cst_60 {dimension_numbers = #tpu.dot_dimension_numbers<[1], [0], [0], [1], [0, 0, 1, 1], [], []>} : vector<2x32xbf16>, vector<32x128xbf16>, vector<2x128xf32> -> vector<2x128xf32>
    %94 = arith.addf %91, %93 : vector<2x128xf32>
    %95 = arith.negf %94 : vector<2x128xf32>
    %96 = math.exp %95 : vector<2x128xf32>
    %cst_61 = arith.constant 1.000000e+00 : f32
    %97 = vector.broadcast %cst_61 : f32 to vector<2x128xf32>
    %98 = arith.addf %97, %96 : vector<2x128xf32>
    %99 = arith.divf %97, %98 : vector<2x128xf32>
    %100 = math.tanh %94 : vector<2x128xf32>
    %101 = vector.extract_strided_slice %99 {offsets = [0, 0], sizes = [2, 32], strides = [1, 1]} : vector<2x128xf32> to vector<2x32xf32>
    %102 = vector.extract_strided_slice %99 {offsets = [0, 32], sizes = [2, 32], strides = [1, 1]} : vector<2x128xf32> to vector<2x32xf32>
    %103 = vector.extract_strided_slice %100 {offsets = [0, 64], sizes = [2, 32], strides = [1, 1]} : vector<2x128xf32> to vector<2x32xf32>
    %104 = vector.extract_strided_slice %99 {offsets = [0, 96], sizes = [2, 32], strides = [1, 1]} : vector<2x128xf32> to vector<2x32xf32>
    %105 = arith.mulf %102, %86 : vector<2x32xf32>
    %106 = arith.mulf %101, %103 : vector<2x32xf32>
    %107 = arith.addf %105, %106 : vector<2x32xf32>
    %108 = math.tanh %107 : vector<2x32xf32>
    %109 = arith.mulf %104, %108 : vector<2x32xf32>
    %110 = arith.truncf %109 : vector<2x32xf32> to vector<2x32xbf16>
    %c2 = arith.constant 2 : index
    %c0_62 = arith.constant 0 : index
    %111 = vector.load %arg17[%c2, %c0_62] : memref<14x32xbf16, #tpu.memory_space<vmem>>, vector<2x32xbf16>
    tpu.vector_store %arg17[%c2, %c0_62], %110 {strides = array<i32>} : memref<14x32xbf16, #tpu.memory_space<vmem>>, vector<2x32xbf16>,
    %112 = vector.extract_strided_slice %68 {offsets = [4, 0], sizes = [2, 128], strides = [1, 1]} : vector<14x128xf32> to vector<2x128xf32>
    %113 = arith.truncf %109 : vector<2x32xf32> to vector<2x32xbf16>
    %cst_63 = arith.constant dense<0.000000e+00> : vector<2x128xf32>
    %114 = tpu.matmul %113, %69, %cst_63 {dimension_numbers = #tpu.dot_dimension_numbers<[1], [0], [0], [1], [0, 0, 1, 1], [], []>} : vector<2x32xbf16>, vector<32x128xbf16>, vector<2x128xf32> -> vector<2x128xf32>
    %115 = arith.addf %112, %114 : vector<2x128xf32>
    %116 = arith.negf %115 : vector<2x128xf32>
    %117 = math.exp %116 : vector<2x128xf32>
    %cst_64 = arith.constant 1.000000e+00 : f32
    %118 = vector.broadcast %cst_64 : f32 to vector<2x128xf32>
    %119 = arith.addf %118, %117 : vector<2x128xf32>
    %120 = arith.divf %118, %119 : vector<2x128xf32>
    %121 = math.tanh %115 : vector<2x128xf32>
    %122 = vector.extract_strided_slice %120 {offsets = [0, 0], sizes = [2, 32], strides = [1, 1]} : vector<2x128xf32> to vector<2x32xf32>
    %123 = vector.extract_strided_slice %120 {offsets = [0, 32], sizes = [2, 32], strides = [1, 1]} : vector<2x128xf32> to vector<2x32xf32>
    %124 = vector.extract_strided_slice %121 {offsets = [0, 64], sizes = [2, 32], strides = [1, 1]} : vector<2x128xf32> to vector<2x32xf32>
    %125 = vector.extract_strided_slice %120 {offsets = [0, 96], sizes = [2, 32], strides = [1, 1]} : vector<2x128xf32> to vector<2x32xf32>
    %126 = arith.mulf %123, %107 : vector<2x32xf32>
    %127 = arith.mulf %122, %124 : vector<2x32xf32>
    %128 = arith.addf %126, %127 : vector<2x32xf32>
    %129 = math.tanh %128 : vector<2x32xf32>
    %130 = arith.mulf %125, %129 : vector<2x32xf32>
    %131 = arith.truncf %130 : vector<2x32xf32> to vector<2x32xbf16>
    %c4 = arith.constant 4 : index
    %c0_65 = arith.constant 0 : index
    %132 = vector.load %arg17[%c4, %c0_65] : memref<14x32xbf16, #tpu.memory_space<vmem>>, vector<2x32xbf16>
    tpu.vector_store %arg17[%c4, %c0_65], %131 {strides = array<i32>} : memref<14x32xbf16, #tpu.memory_space<vmem>>, vector<2x32xbf16>,
    %133 = vector.extract_strided_slice %68 {offsets = [6, 0], sizes = [2, 128], strides = [1, 1]} : vector<14x128xf32> to vector<2x128xf32>
    %134 = arith.truncf %130 : vector<2x32xf32> to vector<2x32xbf16>
    %cst_66 = arith.constant dense<0.000000e+00> : vector<2x128xf32>
    %135 = tpu.matmul %134, %69, %cst_66 {dimension_numbers = #tpu.dot_dimension_numbers<[1], [0], [0], [1], [0, 0, 1, 1], [], []>} : vector<2x32xbf16>, vector<32x128xbf16>, vector<2x128xf32> -> vector<2x128xf32>
    %136 = arith.addf %133, %135 : vector<2x128xf32>
    %137 = arith.negf %136 : vector<2x128xf32>
    %138 = math.exp %137 : vector<2x128xf32>
    %cst_67 = arith.constant 1.000000e+00 : f32
    %139 = vector.broadcast %cst_67 : f32 to vector<2x128xf32>
    %140 = arith.addf %139, %138 : vector<2x128xf32>
    %141 = arith.divf %139, %140 : vector<2x128xf32>
    %142 = math.tanh %136 : vector<2x128xf32>
    %143 = vector.extract_strided_slice %141 {offsets = [0, 0], sizes = [2, 32], strides = [1, 1]} : vector<2x128xf32> to vector<2x32xf32>
    %144 = vector.extract_strided_slice %141 {offsets = [0, 32], sizes = [2, 32], strides = [1, 1]} : vector<2x128xf32> to vector<2x32xf32>
    %145 = vector.extract_strided_slice %142 {offsets = [0, 64], sizes = [2, 32], strides = [1, 1]} : vector<2x128xf32> to vector<2x32xf32>
    %146 = vector.extract_strided_slice %141 {offsets = [0, 96], sizes = [2, 32], strides = [1, 1]} : vector<2x128xf32> to vector<2x32xf32>
    %147 = arith.mulf %144, %128 : vector<2x32xf32>
    %148 = arith.mulf %143, %145 : vector<2x32xf32>
    %149 = arith.addf %147, %148 : vector<2x32xf32>
    %150 = math.tanh %149 : vector<2x32xf32>
    %151 = arith.mulf %146, %150 : vector<2x32xf32>
    %152 = arith.truncf %151 : vector<2x32xf32> to vector<2x32xbf16>
    %c6 = arith.constant 6 : index
    %c0_68 = arith.constant 0 : index
    %153 = vector.load %arg17[%c6, %c0_68] : memref<14x32xbf16, #tpu.memory_space<vmem>>, vector<2x32xbf16>
    tpu.vector_store %arg17[%c6, %c0_68], %152 {strides = array<i32>} : memref<14x32xbf16, #tpu.memory_space<vmem>>, vector<2x32xbf16>,
    %154 = vector.extract_strided_slice %68 {offsets = [8, 0], sizes = [2, 128], strides = [1, 1]} : vector<14x128xf32> to vector<2x128xf32>
    %155 = arith.truncf %151 : vector<2x32xf32> to vector<2x32xbf16>
    %cst_69 = arith.constant dense<0.000000e+00> : vector<2x128xf32>
    %156 = tpu.matmul %155, %69, %cst_69 {dimension_numbers = #tpu.dot_dimension_numbers<[1], [0], [0], [1], [0, 0, 1, 1], [], []>} : vector<2x32xbf16>, vector<32x128xbf16>, vector<2x128xf32> -> vector<2x128xf32>
    %157 = arith.addf %154, %156 : vector<2x128xf32>
    %158 = arith.negf %157 : vector<2x128xf32>
    %159 = math.exp %158 : vector<2x128xf32>
    %cst_70 = arith.constant 1.000000e+00 : f32
    %160 = vector.broadcast %cst_70 : f32 to vector<2x128xf32>
    %161 = arith.addf %160, %159 : vector<2x128xf32>
    %162 = arith.divf %160, %161 : vector<2x128xf32>
    %163 = math.tanh %157 : vector<2x128xf32>
    %164 = vector.extract_strided_slice %162 {offsets = [0, 0], sizes = [2, 32], strides = [1, 1]} : vector<2x128xf32> to vector<2x32xf32>
    %165 = vector.extract_strided_slice %162 {offsets = [0, 32], sizes = [2, 32], strides = [1, 1]} : vector<2x128xf32> to vector<2x32xf32>
    %166 = vector.extract_strided_slice %163 {offsets = [0, 64], sizes = [2, 32], strides = [1, 1]} : vector<2x128xf32> to vector<2x32xf32>
    %167 = vector.extract_strided_slice %162 {offsets = [0, 96], sizes = [2, 32], strides = [1, 1]} : vector<2x128xf32> to vector<2x32xf32>
    %168 = arith.mulf %165, %149 : vector<2x32xf32>
    %169 = arith.mulf %164, %166 : vector<2x32xf32>
    %170 = arith.addf %168, %169 : vector<2x32xf32>
    %171 = math.tanh %170 : vector<2x32xf32>
    %172 = arith.mulf %167, %171 : vector<2x32xf32>
    %173 = arith.truncf %172 : vector<2x32xf32> to vector<2x32xbf16>
    %c8 = arith.constant 8 : index
    %c0_71 = arith.constant 0 : index
    %174 = vector.load %arg17[%c8, %c0_71] : memref<14x32xbf16, #tpu.memory_space<vmem>>, vector<2x32xbf16>
    tpu.vector_store %arg17[%c8, %c0_71], %173 {strides = array<i32>} : memref<14x32xbf16, #tpu.memory_space<vmem>>, vector<2x32xbf16>,
    %175 = vector.extract_strided_slice %68 {offsets = [10, 0], sizes = [2, 128], strides = [1, 1]} : vector<14x128xf32> to vector<2x128xf32>
    %176 = arith.truncf %172 : vector<2x32xf32> to vector<2x32xbf16>
    %cst_72 = arith.constant dense<0.000000e+00> : vector<2x128xf32>
    %177 = tpu.matmul %176, %69, %cst_72 {dimension_numbers = #tpu.dot_dimension_numbers<[1], [0], [0], [1], [0, 0, 1, 1], [], []>} : vector<2x32xbf16>, vector<32x128xbf16>, vector<2x128xf32> -> vector<2x128xf32>
    %178 = arith.addf %175, %177 : vector<2x128xf32>
    %179 = arith.negf %178 : vector<2x128xf32>
    %180 = math.exp %179 : vector<2x128xf32>
    %cst_73 = arith.constant 1.000000e+00 : f32
    %181 = vector.broadcast %cst_73 : f32 to vector<2x128xf32>
    %182 = arith.addf %181, %180 : vector<2x128xf32>
    %183 = arith.divf %181, %182 : vector<2x128xf32>
    %184 = math.tanh %178 : vector<2x128xf32>
    %185 = vector.extract_strided_slice %183 {offsets = [0, 0], sizes = [2, 32], strides = [1, 1]} : vector<2x128xf32> to vector<2x32xf32>
    %186 = vector.extract_strided_slice %183 {offsets = [0, 32], sizes = [2, 32], strides = [1, 1]} : vector<2x128xf32> to vector<2x32xf32>
    %187 = vector.extract_strided_slice %184 {offsets = [0, 64], sizes = [2, 32], strides = [1, 1]} : vector<2x128xf32> to vector<2x32xf32>
    %188 = vector.extract_strided_slice %183 {offsets = [0, 96], sizes = [2, 32], strides = [1, 1]} : vector<2x128xf32> to vector<2x32xf32>
    %189 = arith.mulf %186, %170 : vector<2x32xf32>
    %190 = arith.mulf %185, %187 : vector<2x32xf32>
    %191 = arith.addf %189, %190 : vector<2x32xf32>
    %192 = math.tanh %191 : vector<2x32xf32>
    %193 = arith.mulf %188, %192 : vector<2x32xf32>
    %194 = arith.truncf %193 : vector<2x32xf32> to vector<2x32xbf16>
    %c10 = arith.constant 10 : index
    %c0_74 = arith.constant 0 : index
    %195 = vector.load %arg17[%c10, %c0_74] : memref<14x32xbf16, #tpu.memory_space<vmem>>, vector<2x32xbf16>
    tpu.vector_store %arg17[%c10, %c0_74], %194 {strides = array<i32>} : memref<14x32xbf16, #tpu.memory_space<vmem>>, vector<2x32xbf16>,
    %196 = vector.extract_strided_slice %68 {offsets = [12, 0], sizes = [2, 128], strides = [1, 1]} : vector<14x128xf32> to vector<2x128xf32>
    %197 = arith.truncf %193 : vector<2x32xf32> to vector<2x32xbf16>
    %cst_75 = arith.constant dense<0.000000e+00> : vector<2x128xf32>
    %198 = tpu.matmul %197, %69, %cst_75 {dimension_numbers = #tpu.dot_dimension_numbers<[1], [0], [0], [1], [0, 0, 1, 1], [], []>} : vector<2x32xbf16>, vector<32x128xbf16>, vector<2x128xf32> -> vector<2x128xf32>
    %199 = arith.addf %196, %198 : vector<2x128xf32>
    %200 = arith.negf %199 : vector<2x128xf32>
    %201 = math.exp %200 : vector<2x128xf32>
    %cst_76 = arith.constant 1.000000e+00 : f32
    %202 = vector.broadcast %cst_76 : f32 to vector<2x128xf32>
    %203 = arith.addf %202, %201 : vector<2x128xf32>
    %204 = arith.divf %202, %203 : vector<2x128xf32>
    %205 = math.tanh %199 : vector<2x128xf32>
    %206 = vector.extract_strided_slice %204 {offsets = [0, 0], sizes = [2, 32], strides = [1, 1]} : vector<2x128xf32> to vector<2x32xf32>
    %207 = vector.extract_strided_slice %204 {offsets = [0, 32], sizes = [2, 32], strides = [1, 1]} : vector<2x128xf32> to vector<2x32xf32>
    %208 = vector.extract_strided_slice %205 {offsets = [0, 64], sizes = [2, 32], strides = [1, 1]} : vector<2x128xf32> to vector<2x32xf32>
    %209 = vector.extract_strided_slice %204 {offsets = [0, 96], sizes = [2, 32], strides = [1, 1]} : vector<2x128xf32> to vector<2x32xf32>
    %210 = arith.mulf %207, %191 : vector<2x32xf32>
    %211 = arith.mulf %206, %208 : vector<2x32xf32>
    %212 = arith.addf %210, %211 : vector<2x32xf32>
    %213 = math.tanh %212 : vector<2x32xf32>
    %214 = arith.mulf %209, %213 : vector<2x32xf32>
    %215 = arith.truncf %214 : vector<2x32xf32> to vector<2x32xbf16>
    %c12 = arith.constant 12 : index
    %c0_77 = arith.constant 0 : index
    %216 = vector.load %arg17[%c12, %c0_77] : memref<14x32xbf16, #tpu.memory_space<vmem>>, vector<2x32xbf16>
    tpu.vector_store %arg17[%c12, %c0_77], %215 {strides = array<i32>} : memref<14x32xbf16, #tpu.memory_space<vmem>>, vector<2x32xbf16>,
    %c0_78 = arith.constant 0 : index
    %c0_79 = arith.constant 0 : index
    %217 = vector.load %arg17[%c0_78, %c0_79] : memref<14x32xbf16, #tpu.memory_space<vmem>>, vector<14x32xbf16>
    %c0_80 = arith.constant 0 : index
    %c0_81 = arith.constant 0 : index
    %218 = vector.load %arg13[%c0_80, %c0_81] : memref<32x128xbf16, #tpu.memory_space<vmem>>, vector<32x128xbf16>
    %cst_82 = arith.constant dense<0.000000e+00> : vector<14x128xf32>
    %219 = tpu.matmul %217, %218, %cst_82 {dimension_numbers = #tpu.dot_dimension_numbers<[1], [0], [0], [1], [0, 0, 1, 1], [], []>} : vector<14x32xbf16>, vector<32x128xbf16>, vector<14x128xf32> -> vector<14x128xf32>
    %c0_83 = arith.constant 0 : index
    %c0_84 = arith.constant 0 : index
    %220 = vector.load %arg14[%c0_83, %c0_84] : memref<1x128xf32, #tpu.memory_space<vmem>>, vector<1x128xf32>
    %221 = vector.broadcast %220 : vector<1x128xf32> to vector<14x128xf32>
    %222 = arith.addf %219, %221 : vector<14x128xf32>
    %c0_85 = arith.constant 0 : index
    %c0_86 = arith.constant 0 : index
    %223 = vector.load %arg15[%c0_85, %c0_86] : memref<14x128xf32, #tpu.memory_space<vmem>>, vector<14x128xf32>
    tpu.vector_store %arg15[%c0_85, %c0_86], %222 {strides = array<i32>} : memref<14x128xf32, #tpu.memory_space<vmem>>, vector<14x128xf32>,
    return
  }
}

</mosaic_0001>

<llo_original>
// kernel: caption_generator_receiver_forward.1
$region0: #{caption_generator_receiver_forward.1}
  #allocation0 [shape = 'u32[]', space=smem, size = 0x4, offset = 0x4, fixed_abs, tag = 'smem constant byte address 0x4 - core index']
  #allocation1 [shape = 'u32[72,128]{1,0:T(1,128)}', space=vmem, size = 0x9000, scoped, tag = 'internal scratch']
  #allocation2 [shape = 'bf16[2,512]{1,0:T(2,128)(2,1)}', space=vmem, size = 0x800, scoped, tag = 'scratch operand']
  #allocation3 [shape = 'bf16[14,32]{1,0:T(8,128)(2,1)}', space=vmem, size = 0x1000, scoped, tag = 'scratch operand']
  %s0 = inlined_call_operand.vmem [shape: bf16[36,128], index: 0, kind: input, shape index: {}]
  %s1 = inlined_call_operand.vmem [shape: bf16[8,36], index: 1, kind: input, shape index: {}]
  %s2 = inlined_call_operand.vmem [shape: f32[8,1], index: 2, kind: input, shape index: {}]
  %s3 = inlined_call_operand.vmem [shape: bf16[512,32], index: 3, kind: input, shape index: {}]
  %s4 = inlined_call_operand.vmem [shape: f32[1,32], index: 4, kind: input, shape index: {}]
  %s5 = inlined_call_operand.vmem [shape: bf16[2,16], index: 5, kind: input, shape index: {}]
  %s6 = inlined_call_operand.vmem [shape: bf16[32,32], index: 6, kind: input, shape index: {}]
  %s7 = inlined_call_operand.vmem [shape: bf16[16,32], index: 7, kind: input, shape index: {}]
  %s8 = inlined_call_operand.vmem [shape: f32[1,32], index: 8, kind: input, shape index: {}]
  %s9 = inlined_call_operand.vmem [shape: s32[14,1], index: 9, kind: input, shape index: {}]
  %s10 = inlined_call_operand.vmem [shape: bf16[128,128], index: 10, kind: input, shape index: {}]
  %s11 = inlined_call_operand.vmem [shape: bf16[32,128], index: 11, kind: input, shape index: {}]
  %s12 = inlined_call_operand.vmem [shape: f32[1,128], index: 12, kind: input, shape index: {}]
  %s13 = inlined_call_operand.vmem [shape: bf16[32,128], index: 13, kind: input, shape index: {}]
  %s14 = inlined_call_operand.vmem [shape: f32[1,128], index: 14, kind: input, shape index: {}]
  %s15 = inlined_call_operand.vmem [shape: f32[14,128], index: 15, kind: output, shape index: {}]
  %s16 = sld [smem:[#allocation0]]
  $region70: #{caption_generator_receiver_forward.1} parent=0
    _
  %s18 = ssub.s32 1, %s16
  %s19 = scalar_select 0, %s18, %s16
  // Predicated region
  $region2: #{caption_generator_receiver_forward.1} parent=0 // pred_check
    _
  $region3: #{caption_generator_receiver_forward.1} parent=0 // pred_check_branch
    %21 = sbr.rel (0) target = $region5
  $region4: #{caption_generator_receiver_forward.1} parent=0 // pred_region
    _
  $region5: #{caption_generator_receiver_forward.1} parent=0 // pred_fallthru
    _
  // Predicated region
  $region6: #{caption_generator_receiver_forward.1} parent=0 // pred_check
    _
  $region7: #{caption_generator_receiver_forward.1} parent=0 // pred_check_branch
    %23 = sbr.rel (0) target = $region9
  $region8: #{caption_generator_receiver_forward.1} parent=0 // pred_region
    _
  $region9: #{caption_generator_receiver_forward.1} parent=0 // pred_fallthru
    _
  // Predicated region
  $region10: #{caption_generator_receiver_forward.1} parent=0 // pred_check
    _
  $region11: #{caption_generator_receiver_forward.1} parent=0 // pred_check_branch
    %25 = sbr.rel (0) target = $region13
  $region12: #{caption_generator_receiver_forward.1} parent=0 // pred_region
    _
  $region13: #{caption_generator_receiver_forward.1} parent=0 // pred_fallthru
    _
  // Predicated region
  $region14: #{caption_generator_receiver_forward.1} parent=0 // pred_check
    _
  $region15: #{caption_generator_receiver_forward.1} parent=0 // pred_check_branch
    %27 = sbr.rel (0) target = $region17
  $region16: #{caption_generator_receiver_forward.1} parent=0 // pred_region
    _
  $region17: #{caption_generator_receiver_forward.1} parent=0 // pred_fallthru
    _
  // Predicated region
  $region18: #{caption_generator_receiver_forward.1} parent=0 // pred_check
    _
  $region19: #{caption_generator_receiver_forward.1} parent=0 // pred_check_branch
    %29 = sbr.rel (0) target = $region21
  $region20: #{caption_generator_receiver_forward.1} parent=0 // pred_region
    _
  $region21: #{caption_generator_receiver_forward.1} parent=0 // pred_fallthru
    _
  // Predicated region
  $region22: #{caption_generator_receiver_forward.1} parent=0 // pred_check
    _
  $region23: #{caption_generator_receiver_forward.1} parent=0 // pred_check_branch
    %31 = sbr.rel (0) target = $region25
  $region24: #{caption_generator_receiver_forward.1} parent=0 // pred_region
    _
  $region25: #{caption_generator_receiver_forward.1} parent=0 // pred_fallthru
    _
  // Predicated region
  $region26: #{caption_generator_receiver_forward.1} parent=0 // pred_check
    _
  $region27: #{caption_generator_receiver_forward.1} parent=0 // pred_check_branch
    %33 = sbr.rel (0) target = $region29
  $region28: #{caption_generator_receiver_forward.1} parent=0 // pred_region
    _
  $region29: #{caption_generator_receiver_forward.1} parent=0 // pred_fallthru
    _
  // Predicated region
  $region30: #{caption_generator_receiver_forward.1} parent=0 // pred_check
    _
  $region31: #{caption_generator_receiver_forward.1} parent=0 // pred_check_branch
    %35 = sbr.rel (0) target = $region33
  $region32: #{caption_generator_receiver_forward.1} parent=0 // pred_region
    _
  $region33: #{caption_generator_receiver_forward.1} parent=0 // pred_fallthru
    _
  // Predicated region
  $region34: #{caption_generator_receiver_forward.1} parent=0 // pred_check
    _
  $region35: #{caption_generator_receiver_forward.1} parent=0 // pred_check_branch
    %37 = sbr.rel (0) target = $region37
  $region36: #{caption_generator_receiver_forward.1} parent=0 // pred_region
    _
  $region37: #{caption_generator_receiver_forward.1} parent=0 // pred_fallthru
    _
  // Predicated region
  $region38: #{caption_generator_receiver_forward.1} parent=0 // pred_check
    _
  $region39: #{caption_generator_receiver_forward.1} parent=0 // pred_check_branch
    %39 = sbr.rel (0) target = $region41
  $region40: #{caption_generator_receiver_forward.1} parent=0 // pred_region
    _
  $region41: #{caption_generator_receiver_forward.1} parent=0 // pred_fallthru
    _
  // Predicated region
  $region42: #{caption_generator_receiver_forward.1} parent=0 // pred_check
    _
  $region43: #{caption_generator_receiver_forward.1} parent=0 // pred_check_branch
    %41 = sbr.rel (0) target = $region45
  $region44: #{caption_generator_receiver_forward.1} parent=0 // pred_region
    _
  $region45: #{caption_generator_receiver_forward.1} parent=0 // pred_fallthru
    _
  // Predicated region
  $region46: #{caption_generator_receiver_forward.1} parent=0 // pred_check
    _
  $region47: #{caption_generator_receiver_forward.1} parent=0 // pred_check_branch
    %43 = sbr.rel (0) target = $region49
  $region48: #{caption_generator_receiver_forward.1} parent=0 // pred_region
    _
  $region49: #{caption_generator_receiver_forward.1} parent=0 // pred_fallthru
    _
  // Predicated region
  $region50: #{caption_generator_receiver_forward.1} parent=0 // pred_check
    _
  $region51: #{caption_generator_receiver_forward.1} parent=0 // pred_check_branch
    %45 = sbr.rel (0) target = $region53
  $region52: #{caption_generator_receiver_forward.1} parent=0 // pred_region
    _
  $region53: #{caption_generator_receiver_forward.1} parent=0 // pred_fallthru
    _
  // Predicated region
  $region54: #{caption_generator_receiver_forward.1} parent=0 // pred_check
    _
  $region55: #{caption_generator_receiver_forward.1} parent=0 // pred_check_branch
    %47 = sbr.rel (0) target = $region57
  $region56: #{caption_generator_receiver_forward.1} parent=0 // pred_region
    _
  $region57: #{caption_generator_receiver_forward.1} parent=0 // pred_fallthru
    _
  // Predicated region
  $region58: #{caption_generator_receiver_forward.1} parent=0 // pred_check
    _
  $region59: #{caption_generator_receiver_forward.1} parent=0 // pred_check_branch
    %49 = sbr.rel (0) target = $region61
  $region60: #{caption_generator_receiver_forward.1} parent=0 // pred_region
    _
  $region61: #{caption_generator_receiver_forward.1} parent=0 // pred_fallthru
    _
  %v51 = vld [vmem:[%s1] sm:$0xf]
  %v52 = vld [vmem:[%s0] sm:$0xf]
  %v53 = vld [vmem:[%s0 + $0x4] sm:$0xf]
  %v54 = vld [vmem:[%s0 + $0x8] sm:$0xf]
  %v55 = vld [vmem:[%s0 + $0xc] sm:$0xf]
  %v56 = vld [vmem:[%s0 + $0x10] sm:$0x3]
  %v57 = vld [vmem:[%s2] sm:$0xff]
  %59 = vset.pattern.permute.xlu0 0
  %60 = vperm.xlu0 %59, %v57
  %v61 = vpop.permute.xlu0 %60
  %v68 = vunpack.c.l.b16 %v52
  %v69 = vunpack.c.l.b16 %v53
  %v70 = vunpack.c.l.b16 %v54
  %v71 = vunpack.c.l.b16 %v55
  %v72 = vunpack.c.l.b16 %v56
  %v73 = vpack.c.b16 %v69, %v68
  %v74 = vpack.c.b16 %v71, %v70
  %v75 = vpack.c.b16 %v72, %v72
  %vm78 = vcmask 293888
  %v80 = vsel %vm78, %v51, 0
  %vm82 = vcmask 1041408
  %v84 = vsel %vm82, %v75, 0
  %86 = vmatpush.bf16.msra.mxu0 0
  %87 = vmatpush.bf16.msra.mxu0 0
  %88 = vmatpush.bf16.msra.mxu0 0
  %89 = vmatpush.bf16.msra.mxu0 0
  %90 = vmatpush.bf16.msra.mxu0 0
  %91 = vmatpush.bf16.msra.mxu0 %v84
  %92 = vmatpush.bf16.msra.mxu0 %v74
  %93 = vmatpush.bf16.msra.mxu0 %v73
  %94 = vmatmul.bf16.gmra.mxu0 %v80
  %v95 = vpop.f32.mrf.mxu0
  %v96 = vadd.f32 %v61, %v95
  %v97 = vpop.f32.mrf.mxu0
  %98 = vdwg.mxu0
  %v99 = vmax.f32 %v96, 0.0
  %v100 = vpack.c.bf16 %v99, %v99
  %vm101 = vcmask 516096
  %vm102 = vsmask.f32 256
  %vm103 = vmand %vm101, %vm102
  %v104 = vld [vmem:[#allocation2] sm:$0x1]
  %v105 = vsel %vm103, %v100, %v104
  %106 = vst [vmem:[#allocation2] sm:$0x1] %v105
  %v108 = vrot.slane %v100, 3
  %vm109 = vcmask 1040384
  %v112 = vsel %vm109, %v100, %v108
  %v113 = vshrl.u32 %v112, 16
  %v115 = vrot.slane %v113, 7
  %v116 = vrot.slane %v115, 1
  %117 = vrot.lane.b32.xlu0 %v116, 64
  %v118 = vpop.permute.xlu0 %117
  %vm120 = vcmask 1040896
  %vm121 = vmand %vm120, %vm102
  %v122 = vld [vmem:[#allocation2] sm:$0x1]
  %v123 = vsel %vm121, %v118, %v122
  %124 = vst [vmem:[#allocation2] sm:$0x1] %v123
  %125 = vst [vmem:[#allocation1] sm:$0xff] %v100
  %s126 = scalar_lea.vmem [#allocation1], 1
  %v127 = vld [vmem:[%s126] ss:$4 sm:$0xff]
  %v129 = vld [vmem:[#allocation2 + $0x1] sm:$0x1]
  %v130 = vsel %vm103, %v127, %v129
  %131 = vst [vmem:[#allocation2 + $0x1] sm:$0x1] %v130
  %132 = vst [vmem:[#allocation1] sm:$0xff] %v100
  %s133 = scalar_lea.vmem [#allocation1], 1
  %v134 = vld [vmem:[%s133] ss:$4 sm:$0xff]
  %v135 = vshrl.u32 %v134, 16
  %v137 = vrot.slane %v135, 7
  %v138 = vrot.slane %v137, 1
  %139 = vrot.lane.b32.xlu0 %v138, 64
  %v140 = vpop.permute.xlu0 %139
  %v142 = vld [vmem:[#allocation2 + $0x1] sm:$0x1]
  %v143 = vsel %vm121, %v140, %v142
  %144 = vst [vmem:[#allocation2 + $0x1] sm:$0x1] %v143
  %145 = vst [vmem:[#allocation1] sm:$0xff] %v100
  %s146 = scalar_lea.vmem [#allocation1], 2
  %v147 = vld [vmem:[%s146] ss:$4 sm:$0xff]
  %v149 = vld [vmem:[#allocation2 + $0x2] sm:$0x1]
  %v150 = vsel %vm103, %v147, %v149
  %151 = vst [vmem:[#allocation2 + $0x2] sm:$0x1] %v150
  %152 = vst [vmem:[#allocation1] sm:$0xff] %v100
  %s153 = scalar_lea.vmem [#allocation1], 2
  %v154 = vld [vmem:[%s153] ss:$4 sm:$0xff]
  %v155 = vshrl.u32 %v154, 16
  %v157 = vrot.slane %v155, 7
  %v158 = vrot.slane %v157, 1
  %159 = vrot.lane.b32.xlu0 %v158, 64
  %v160 = vpop.permute.xlu0 %159
  %v162 = vld [vmem:[#allocation2 + $0x2] sm:$0x1]
  %v163 = vsel %vm121, %v160, %v162
  %164 = vst [vmem:[#allocation2 + $0x2] sm:$0x1] %v163
  %165 = vst [vmem:[#allocation1] sm:$0xff] %v100
  %s166 = scalar_lea.vmem [#allocation1], 3
  %v167 = vld [vmem:[%s166] ss:$4 sm:$0xff]
  %v169 = vld [vmem:[#allocation2 + $0x3] sm:$0x1]
  %v170 = vsel %vm103, %v167, %v169
  %171 = vst [vmem:[#allocation2 + $0x3] sm:$0x1] %v170
  %172 = vst [vmem:[#allocation1] sm:$0xff] %v100
  %s173 = scalar_lea.vmem [#allocation1], 3
  %v174 = vld [vmem:[%s173] ss:$4 sm:$0xff]
  %v175 = vshrl.u32 %v174, 16
  %v177 = vrot.slane %v175, 7
  %v178 = vrot.slane %v177, 1
  %179 = vrot.lane.b32.xlu0 %v178, 64
  %v180 = vpop.permute.xlu0 %179
  %v182 = vld [vmem:[#allocation2 + $0x3] sm:$0x1]
  %v183 = vsel %vm121, %v180, %v182
  %184 = vst [vmem:[#allocation2 + $0x3] sm:$0x1] %v183
  %v185 = vshll.u32 %v112, 16
  %187 = vrot.lane.b32.xlu0 %v185, 64
  %v188 = vpop.permute.xlu0 %187
  %vm190 = vsmask.f32 7938
  %vm191 = vmand %vm101, %vm190
  %v192 = vld [vmem:[#allocation2] sm:$0x1]
  %v193 = vsel %vm191, %v188, %v192
  %194 = vst [vmem:[#allocation2] sm:$0x1] %v193
  %vm195 = vmand %vm120, %vm190
  %v196 = vld [vmem:[#allocation2] sm:$0x1]
  %v197 = vsel %vm195, %v100, %v196
  %198 = vst [vmem:[#allocation2] sm:$0x1] %v197
  %199 = vst [vmem:[#allocation1] sm:$0xff] %v100
  %s200 = scalar_lea.vmem [#allocation1], 1
  %v201 = vld [vmem:[%s200] ss:$4 sm:$0xff]
  %v202 = vshll.u32 %v201, 16
  %204 = vrot.lane.b32.xlu0 %v202, 64
  %v205 = vpop.permute.xlu0 %204
  %v207 = vld [vmem:[#allocation2 + $0x1] sm:$0x1]
  %v208 = vsel %vm191, %v205, %v207
  %209 = vst [vmem:[#allocation2 + $0x1] sm:$0x1] %v208
  %210 = vst [vmem:[#allocation1] sm:$0xff] %v100
  %s211 = scalar_lea.vmem [#allocation1], 1
  %v212 = vld [vmem:[%s211] ss:$4 sm:$0xff]
  %v214 = vld [vmem:[#allocation2 + $0x1] sm:$0x1]
  %v215 = vsel %vm195, %v212, %v214
  %216 = vst [vmem:[#allocation2 + $0x1] sm:$0x1] %v215
  %217 = vst [vmem:[#allocation1] sm:$0xff] %v100
  %s218 = scalar_lea.vmem [#allocation1], 2
  %v219 = vld [vmem:[%s218] ss:$4 sm:$0xff]
  %v220 = vshll.u32 %v219, 16
  %222 = vrot.lane.b32.xlu0 %v220, 64
  %v223 = vpop.permute.xlu0 %222
  %v225 = vld [vmem:[#allocation2 + $0x2] sm:$0x1]
  %v226 = vsel %vm191, %v223, %v225
  %227 = vst [vmem:[#allocation2 + $0x2] sm:$0x1] %v226
  %228 = vst [vmem:[#allocation1] sm:$0xff] %v100
  %s229 = scalar_lea.vmem [#allocation1], 2
  %v230 = vld [vmem:[%s229] ss:$4 sm:$0xff]
  %v232 = vld [vmem:[#allocation2 + $0x2] sm:$0x1]
  %v233 = vsel %vm195, %v230, %v232
  %234 = vst [vmem:[#allocation2 + $0x2] sm:$0x1] %v233
  %235 = vst [vmem:[#allocation1] sm:$0xff] %v100
  %s236 = scalar_lea.vmem [#allocation1], 3
  %v237 = vld [vmem:[%s236] ss:$4 sm:$0xff]
  %v238 = vshll.u32 %v237, 16
  %240 = vrot.lane.b32.xlu0 %v238, 64
  %v241 = vpop.permute.xlu0 %240
  %v243 = vld [vmem:[#allocation2 + $0x3] sm:$0x1]
  %v244 = vsel %vm191, %v241, %v243
  %245 = vst [vmem:[#allocation2 + $0x3] sm:$0x1] %v244
  %246 = vst [vmem:[#allocation1] sm:$0xff] %v100
  %s247 = scalar_lea.vmem [#allocation1], 3
  %v248 = vld [vmem:[%s247] ss:$4 sm:$0xff]
  %v250 = vld [vmem:[#allocation2 + $0x3] sm:$0x1]
  %v251 = vsel %vm195, %v248, %v250
  %252 = vst [vmem:[#allocation2 + $0x3] sm:$0x1] %v251
  %v253 = vld [vmem:[#allocation2] sm:$0xf]
  %v254 = vld [vmem:[%s3] sm:$0xf]
  %v255 = vld [vmem:[%s3 + $0x4] sm:$0xf]
  %v256 = vld [vmem:[%s3 + $0x8] sm:$0xf]
  %v257 = vld [vmem:[%s3 + $0xc] sm:$0xf]
  %v258 = vld [vmem:[%s3 + $0x10] sm:$0xf]
  %v259 = vld [vmem:[%s3 + $0x14] sm:$0xf]
  %v260 = vld [vmem:[%s3 + $0x18] sm:$0xf]
  %v261 = vld [vmem:[%s3 + $0x1c] sm:$0xf]
  %v262 = vld [vmem:[%s3 + $0x20] sm:$0xf]
  %v263 = vld [vmem:[%s3 + $0x24] sm:$0xf]
  %v264 = vld [vmem:[%s3 + $0x28] sm:$0xf]
  %v265 = vld [vmem:[%s3 + $0x2c] sm:$0xf]
  %v266 = vld [vmem:[%s3 + $0x30] sm:$0xf]
  %v267 = vld [vmem:[%s3 + $0x34] sm:$0xf]
  %v268 = vld [vmem:[%s3 + $0x38] sm:$0xf]
  %v269 = vld [vmem:[%s3 + $0x3c] sm:$0xf]
  %v270 = vld [vmem:[%s3 + $0x40] sm:$0xf]
  %v271 = vld [vmem:[%s3 + $0x44] sm:$0xf]
  %v272 = vld [vmem:[%s3 + $0x48] sm:$0xf]
  %v273 = vld [vmem:[%s3 + $0x4c] sm:$0xf]
  %v274 = vld [vmem:[%s3 + $0x50] sm:$0xf]
  %v275 = vld [vmem:[%s3 + $0x54] sm:$0xf]
  %v276 = vld [vmem:[%s3 + $0x58] sm:$0xf]
  %v277 = vld [vmem:[%s3 + $0x5c] sm:$0xf]
  %v278 = vld [vmem:[%s3 + $0x60] sm:$0xf]
  %v279 = vld [vmem:[%s3 + $0x64] sm:$0xf]
  %v280 = vld [vmem:[%s3 + $0x68] sm:$0xf]
  %v281 = vld [vmem:[%s3 + $0x6c] sm:$0xf]
  %v282 = vld [vmem:[%s3 + $0x70] sm:$0xf]
  %v283 = vld [vmem:[%s3 + $0x74] sm:$0xf]
  %v284 = vld [vmem:[%s3 + $0x78] sm:$0xf]
  %v285 = vld [vmem:[%s3 + $0x7c] sm:$0xf]
  %v286 = vld [vmem:[%s3 + $0x80] sm:$0xf]
  %v287 = vld [vmem:[%s3 + $0x84] sm:$0xf]
  %v288 = vld [vmem:[%s3 + $0x88] sm:$0xf]
  %v289 = vld [vmem:[%s3 + $0x8c] sm:$0xf]
  %v290 = vld [vmem:[%s3 + $0x90] sm:$0xf]
  %v291 = vld [vmem:[%s3 + $0x94] sm:$0xf]
  %v292 = vld [vmem:[%s3 + $0x98] sm:$0xf]
  %v293 = vld [vmem:[%s3 + $0x9c] sm:$0xf]
  %v294 = vld [vmem:[%s3 + $0xa0] sm:$0xf]
  %v295 = vld [vmem:[%s3 + $0xa4] sm:$0xf]
  %v296 = vld [vmem:[%s3 + $0xa8] sm:$0xf]
  %v297 = vld [vmem:[%s3 + $0xac] sm:$0xf]
  %v298 = vld [vmem:[%s3 + $0xb0] sm:$0xf]
  %v299 = vld [vmem:[%s3 + $0xb4] sm:$0xf]
  %v300 = vld [vmem:[%s3 + $0xb8] sm:$0xf]
  %v301 = vld [vmem:[%s3 + $0xbc] sm:$0xf]
  %v302 = vld [vmem:[%s3 + $0xc0] sm:$0xf]
  %v303 = vld [vmem:[%s3 + $0xc4] sm:$0xf]
  %v304 = vld [vmem:[%s3 + $0xc8] sm:$0xf]
  %v305 = vld [vmem:[%s3 + $0xcc] sm:$0xf]
  %v306 = vld [vmem:[%s3 + $0xd0] sm:$0xf]
  %v307 = vld [vmem:[%s3 + $0xd4] sm:$0xf]
  %v308 = vld [vmem:[%s3 + $0xd8] sm:$0xf]
  %v309 = vld [vmem:[%s3 + $0xdc] sm:$0xf]
  %v310 = vld [vmem:[%s3 + $0xe0] sm:$0xf]
  %v311 = vld [vmem:[%s3 + $0xe4] sm:$0xf]
  %v312 = vld [vmem:[%s3 + $0xe8] sm:$0xf]
  %v313 = vld [vmem:[%s3 + $0xec] sm:$0xf]
  %v314 = vld [vmem:[%s3 + $0xf0] sm:$0xf]
  %v315 = vld [vmem:[%s3 + $0xf4] sm:$0xf]
  %v316 = vld [vmem:[%s3 + $0xf8] sm:$0xf]
  %v317 = vld [vmem:[%s3 + $0xfc] sm:$0xf]
  %v318 = vld [vmem:[%s4] sm:$0x1]
  %v320 = vperm.slane %v318, 0
  %323 = vst [vmem:[#allocation1] ss:$9 sm:$0xff] %v253
  %v324 = vld [vmem:[#allocation1] sm:$0xff]
  %v325 = vld [vmem:[#allocation1 + $0x9] sm:$0xff]
  %v326 = vld [vmem:[#allocation1 + $0x12] sm:$0xff]
  %v327 = vld [vmem:[#allocation1 + $0x1b] sm:$0xff]
  %v396 = vunpack.c.l.b16 %v254
  %v397 = vunpack.c.l.b16 %v255
  %v398 = vunpack.c.l.b16 %v256
  %v399 = vunpack.c.l.b16 %v257
  %v400 = vunpack.c.l.b16 %v258
  %v401 = vunpack.c.l.b16 %v259
  %v402 = vunpack.c.l.b16 %v260
  %v403 = vunpack.c.l.b16 %v261
  %v404 = vunpack.c.l.b16 %v262
  %v405 = vunpack.c.l.b16 %v263
  %v406 = vunpack.c.l.b16 %v264
  %v407 = vunpack.c.l.b16 %v265
  %v408 = vunpack.c.l.b16 %v266
  %v409 = vunpack.c.l.b16 %v267
  %v410 = vunpack.c.l.b16 %v268
  %v411 = vunpack.c.l.b16 %v269
  %v412 = vunpack.c.l.b16 %v270
  %v413 = vunpack.c.l.b16 %v271
  %v414 = vunpack.c.l.b16 %v272
  %v415 = vunpack.c.l.b16 %v273
  %v416 = vunpack.c.l.b16 %v274
  %v417 = vunpack.c.l.b16 %v275
  %v418 = vunpack.c.l.b16 %v276
  %v419 = vunpack.c.l.b16 %v277
  %v420 = vunpack.c.l.b16 %v278
  %v421 = vunpack.c.l.b16 %v279
  %v422 = vunpack.c.l.b16 %v280
  %v423 = vunpack.c.l.b16 %v281
  %v424 = vunpack.c.l.b16 %v282
  %v425 = vunpack.c.l.b16 %v283
  %v426 = vunpack.c.l.b16 %v284
  %v427 = vunpack.c.l.b16 %v285
  %v428 = vunpack.c.l.b16 %v286
  %v429 = vunpack.c.l.b16 %v287
  %v430 = vunpack.c.l.b16 %v288
  %v431 = vunpack.c.l.b16 %v289
  %v432 = vunpack.c.l.b16 %v290
  %v433 = vunpack.c.l.b16 %v291
  %v434 = vunpack.c.l.b16 %v292
  %v435 = vunpack.c.l.b16 %v293
  %v436 = vunpack.c.l.b16 %v294
  %v437 = vunpack.c.l.b16 %v295
  %v438 = vunpack.c.l.b16 %v296
  %v439 = vunpack.c.l.b16 %v297
  %v440 = vunpack.c.l.b16 %v298
  %v441 = vunpack.c.l.b16 %v299
  %v442 = vunpack.c.l.b16 %v300
  %v443 = vunpack.c.l.b16 %v301
  %v444 = vunpack.c.l.b16 %v302
  %v445 = vunpack.c.l.b16 %v303
  %v446 = vunpack.c.l.b16 %v304
  %v447 = vunpack.c.l.b16 %v305
  %v448 = vunpack.c.l.b16 %v306
  %v449 = vunpack.c.l.b16 %v307
  %v450 = vunpack.c.l.b16 %v308
  %v451 = vunpack.c.l.b16 %v309
  %v452 = vunpack.c.l.b16 %v310
  %v453 = vunpack.c.l.b16 %v311
  %v454 = vunpack.c.l.b16 %v312
  %v455 = vunpack.c.l.b16 %v313
  %v456 = vunpack.c.l.b16 %v314
  %v457 = vunpack.c.l.b16 %v315
  %v458 = vunpack.c.l.b16 %v316
  %v459 = vunpack.c.l.b16 %v317
  %v460 = vpack.c.b16 %v397, %v396
  %v461 = vpack.c.b16 %v399, %v398
  %v462 = vpack.c.b16 %v401, %v400
  %v463 = vpack.c.b16 %v403, %v402
  %v464 = vpack.c.b16 %v405, %v404
  %v465 = vpack.c.b16 %v407, %v406
  %v466 = vpack.c.b16 %v409, %v408
  %v467 = vpack.c.b16 %v411, %v410
  %v468 = vpack.c.b16 %v413, %v412
  %v469 = vpack.c.b16 %v415, %v414
  %v470 = vpack.c.b16 %v417, %v416
  %v471 = vpack.c.b16 %v419, %v418
  %v472 = vpack.c.b16 %v421, %v420
  %v473 = vpack.c.b16 %v423, %v422
  %v474 = vpack.c.b16 %v425, %v424
  %v475 = vpack.c.b16 %v427, %v426
  %v476 = vpack.c.b16 %v429, %v428
  %v477 = vpack.c.b16 %v431, %v430
  %v478 = vpack.c.b16 %v433, %v432
  %v479 = vpack.c.b16 %v435, %v434
  %v480 = vpack.c.b16 %v437, %v436
  %v481 = vpack.c.b16 %v439, %v438
  %v482 = vpack.c.b16 %v441, %v440
  %v483 = vpack.c.b16 %v443, %v442
  %v484 = vpack.c.b16 %v445, %v444
  %v485 = vpack.c.b16 %v447, %v446
  %v486 = vpack.c.b16 %v449, %v448
  %v487 = vpack.c.b16 %v451, %v450
  %v488 = vpack.c.b16 %v453, %v452
  %v489 = vpack.c.b16 %v455, %v454
  %v490 = vpack.c.b16 %v457, %v456
  %v491 = vpack.c.b16 %v459, %v458
  %524 = vmatpush.bf16.msra.mxu0 %v467
  %525 = vmatpush.bf16.msra.mxu0 %v466
  %526 = vmatpush.bf16.msra.mxu0 %v465
  %527 = vmatpush.bf16.msra.mxu0 %v464
  %528 = vmatpush.bf16.msra.mxu0 %v463
  %529 = vmatpush.bf16.msra.mxu0 %v462
  %530 = vmatpush.bf16.msra.mxu0 %v461
  %531 = vmatpush.bf16.msra.mxu0 %v460
  %532 = vmatmul.bf16.gmra.mxu0 %v324
  %v533 = vpop.f32.mrf.mxu0
  %v534 = vadd.f32 %v320, %v533
  %v535 = vpop.f32.mrf.mxu0
  %536 = vdwg.mxu0
  %537 = vmatpush.bf16.msra.mxu0 %v475
  %538 = vmatpush.bf16.msra.mxu0 %v474
  %539 = vmatpush.bf16.msra.mxu0 %v473
  %540 = vmatpush.bf16.msra.mxu0 %v472
  %541 = vmatpush.bf16.msra.mxu0 %v471
  %542 = vmatpush.bf16.msra.mxu0 %v470
  %543 = vmatpush.bf16.msra.mxu0 %v469
  %544 = vmatpush.bf16.msra.mxu0 %v468
  %545 = vmatmul.bf16.gmra.mxu0 %v325
  %v546 = vpop.f32.mrf.mxu0
  %v547 = vadd.f32 %v534, %v546
  %v548 = vpop.f32.mrf.mxu0
  %549 = vdwg.mxu0
  %550 = vmatpush.bf16.msra.mxu0 %v483
  %551 = vmatpush.bf16.msra.mxu0 %v482
  %552 = vmatpush.bf16.msra.mxu0 %v481
  %553 = vmatpush.bf16.msra.mxu0 %v480
  %554 = vmatpush.bf16.msra.mxu0 %v479
  %555 = vmatpush.bf16.msra.mxu0 %v478
  %556 = vmatpush.bf16.msra.mxu0 %v477
  %557 = vmatpush.bf16.msra.mxu0 %v476
  %558 = vmatmul.bf16.gmra.mxu0 %v326
  %v559 = vpop.f32.mrf.mxu0
  %v560 = vadd.f32 %v547, %v559
  %v561 = vpop.f32.mrf.mxu0
  %562 = vdwg.mxu0
  %563 = vmatpush.bf16.msra.mxu0 %v491
  %564 = vmatpush.bf16.msra.mxu0 %v490
  %565 = vmatpush.bf16.msra.mxu0 %v489
  %566 = vmatpush.bf16.msra.mxu0 %v488
  %567 = vmatpush.bf16.msra.mxu0 %v487
  %568 = vmatpush.bf16.msra.mxu0 %v486
  %569 = vmatpush.bf16.msra.mxu0 %v485
  %570 = vmatpush.bf16.msra.mxu0 %v484
  %571 = vmatmul.bf16.gmra.mxu0 %v327
  %v572 = vpop.f32.mrf.mxu0
  %v573 = vadd.f32 %v560, %v572
  %v574 = vpop.f32.mrf.mxu0
  %575 = vdwg.mxu0
  %v576 = vpack.c.bf16 %v573, %v573
  %v577 = vld [vmem:[%s6] sm:$0xf]
  %v578 = vld [vmem:[%s6 + $0x4] sm:$0xf]
  %v579 = vld [vmem:[%s6 + $0x8] sm:$0xf]
  %v580 = vld [vmem:[%s6 + $0xc] sm:$0xf]
  %v581 = vld [vmem:[%s5] sm:$0x1]
  %v582 = vld [vmem:[%s7] sm:$0xf]
  %v583 = vld [vmem:[%s7 + $0x4] sm:$0xf]
  %v586 = vunpack.c.l.b16 %v582
  %v587 = vunpack.c.l.b16 %v583
  %v588 = vpack.c.b16 %v587, %v586
  %vm590 = vcmask 130048
  %v592 = vsel %vm590, %v581, 0
  %594 = vmatpush.bf16.msra.mxu0 0
  %595 = vmatpush.bf16.msra.mxu0 0
  %596 = vmatpush.bf16.msra.mxu0 0
  %597 = vmatpush.bf16.msra.mxu0 0
  %598 = vmatpush.bf16.msra.mxu0 0
  %599 = vmatpush.bf16.msra.mxu0 0
  %600 = vmatpush.bf16.msra.mxu0 0
  %601 = vmatpush.bf16.msra.mxu0 %v588
  %602 = vmatmul.bf16.gmra.mxu0 %v592
  %v603 = vpop.f32.mrf.mxu0
  %v604 = vadd.f32 0.0, %v603
  %v605 = vpop.f32.mrf.mxu0
  %606 = vdwg.mxu0
  %v611 = vunpack.c.l.b16 %v577
  %v612 = vunpack.c.l.b16 %v578
  %v613 = vunpack.c.l.b16 %v579
  %v614 = vunpack.c.l.b16 %v580
  %v615 = vpack.c.b16 %v612, %v611
  %v616 = vpack.c.b16 %v614, %v613
  %vm619 = vcmask 261120
  %v621 = vsel %vm619, %v576, 0
  %623 = vmatpush.bf16.msra.mxu0 0
  %624 = vmatpush.bf16.msra.mxu0 0
  %625 = vmatpush.bf16.msra.mxu0 0
  %626 = vmatpush.bf16.msra.mxu0 0
  %627 = vmatpush.bf16.msra.mxu0 0
  %628 = vmatpush.bf16.msra.mxu0 0
  %629 = vmatpush.bf16.msra.mxu0 %v616
  %630 = vmatpush.bf16.msra.mxu0 %v615
  %631 = vmatmul.bf16.gmra.mxu0 %v621
  %v632 = vpop.f32.mrf.mxu0
  %v633 = vadd.f32 %v604, %v632
  %v634 = vpop.f32.mrf.mxu0
  %635 = vdwg.mxu0
  %v636 = vld [vmem:[%s8] sm:$0x1]
  %v638 = vperm.slane %v636, 0
  %v640 = vadd.f32 %v633, %v638
  %v641 = vlaneseq
  %v642 = vand.u32 %v641, 127
  %v643 = vld [vmem:[%s9] sm:$0xff]
  %v644 = vld [vmem:[%s9 + $0x8] sm:$0x3f]
  %645 = vset.pattern.permute.xlu0 0
  %646 = vperm.xlu0 %645, %v643
  %v647 = vpop.permute.xlu0 %646
  %648 = vset.pattern.permute.xlu0 0
  %649 = vperm.xlu0 %648, %v644
  %v650 = vpop.permute.xlu0 %649
  %vm651 = vcmp.eq.s32.totalorder %v642, %v647
  %vm652 = vcmp.eq.s32.totalorder %v642, %v650
  %v653 = vsel %vm651, 1, 0
  %v654 = vsel %vm652, 1, 0
  %v655 = vcvt.s32.f32 %v653
  %v656 = vcvt.s32.f32 %v654
  %v657 = vpack.c.bf16 %v656, %v655
  %v658 = vld [vmem:[%s10] sm:$0xf]
  %v659 = vld [vmem:[%s10 + $0x4] sm:$0xf]
  %v660 = vld [vmem:[%s10 + $0x8] sm:$0xf]
  %v661 = vld [vmem:[%s10 + $0xc] sm:$0xf]
  %v662 = vld [vmem:[%s10 + $0x10] sm:$0xf]
  %v663 = vld [vmem:[%s10 + $0x14] sm:$0xf]
  %v664 = vld [vmem:[%s10 + $0x18] sm:$0xf]
  %v665 = vld [vmem:[%s10 + $0x1c] sm:$0xf]
  %v666 = vld [vmem:[%s10 + $0x20] sm:$0xf]
  %v667 = vld [vmem:[%s10 + $0x24] sm:$0xf]
  %v668 = vld [vmem:[%s10 + $0x28] sm:$0xf]
  %v669 = vld [vmem:[%s10 + $0x2c] sm:$0xf]
  %v670 = vld [vmem:[%s10 + $0x30] sm:$0xf]
  %v671 = vld [vmem:[%s10 + $0x34] sm:$0xf]
  %v672 = vld [vmem:[%s10 + $0x38] sm:$0xf]
  %v673 = vld [vmem:[%s10 + $0x3c] sm:$0xf]
  %v674 = vld [vmem:[%s12] sm:$0x1]
  %v676 = vperm.slane %v674, 0
  %v694 = vunpack.c.l.b16 %v658
  %v695 = vunpack.c.l.b16 %v659
  %v696 = vunpack.c.l.b16 %v660
  %v697 = vunpack.c.l.b16 %v661
  %v698 = vunpack.c.l.b16 %v662
  %v699 = vunpack.c.l.b16 %v663
  %v700 = vunpack.c.l.b16 %v664
  %v701 = vunpack.c.l.b16 %v665
  %v702 = vunpack.c.l.b16 %v666
  %v703 = vunpack.c.l.b16 %v667
  %v704 = vunpack.c.l.b16 %v668
  %v705 = vunpack.c.l.b16 %v669
  %v706 = vunpack.c.l.b16 %v670
  %v707 = vunpack.c.l.b16 %v671
  %v708 = vunpack.c.l.b16 %v672
  %v709 = vunpack.c.l.b16 %v673
  %v710 = vpack.c.b16 %v695, %v694
  %v711 = vpack.c.b16 %v697, %v696
  %v712 = vpack.c.b16 %v699, %v698
  %v713 = vpack.c.b16 %v701, %v700
  %v714 = vpack.c.b16 %v703, %v702
  %v715 = vpack.c.b16 %v705, %v704
  %v716 = vpack.c.b16 %v707, %v706
  %v717 = vpack.c.b16 %v709, %v708
  %726 = vmatpush.bf16.msra.mxu0 %v717
  %727 = vmatpush.bf16.msra.mxu0 %v716
  %728 = vmatpush.bf16.msra.mxu0 %v715
  %729 = vmatpush.bf16.msra.mxu0 %v714
  %730 = vmatpush.bf16.msra.mxu0 %v713
  %731 = vmatpush.bf16.msra.mxu0 %v712
  %732 = vmatpush.bf16.msra.mxu0 %v711
  %733 = vmatpush.bf16.msra.mxu0 %v710
  %734 = vmatmul.bf16.gmra.mxu0 %v657
  %v735 = vpop.f32.mrf.mxu0
  %v736 = vadd.f32 %v676, %v735
  %v737 = vpop.f32.mrf.mxu0
  %v738 = vadd.f32 %v676, %v737
  %739 = vdwg.mxu0
  %v740 = vld [vmem:[%s11] sm:$0xf]
  %v741 = vld [vmem:[%s11 + $0x4] sm:$0xf]
  %v742 = vld [vmem:[%s11 + $0x8] sm:$0xf]
  %v743 = vld [vmem:[%s11 + $0xc] sm:$0xf]
  %v744 = vpack.c.bf16 %v640, %v640
  %v749 = vunpack.c.l.b16 %v740
  %v750 = vunpack.c.l.b16 %v741
  %v751 = vunpack.c.l.b16 %v742
  %v752 = vunpack.c.l.b16 %v743
  %v753 = vpack.c.b16 %v750, %v749
  %v754 = vpack.c.b16 %v752, %v751
  %v758 = vsel %vm619, %v744, 0
  %760 = vmatpush.bf16.msra.mxu0 0
  %761 = vmatpush.bf16.msra.mxu0 0
  %762 = vmatpush.bf16.msra.mxu0 0
  %763 = vmatpush.bf16.msra.mxu0 0
  %764 = vmatpush.bf16.msra.mxu0 0
  %765 = vmatpush.bf16.msra.mxu0 0
  %766 = vmatpush.bf16.msra.mxu0 %v754
  %767 = vmatpush.bf16.msra.mxu0 %v753
  %768 = vmatmul.bf16.gmra.mxu0 %v758
  %v769 = vpop.f32.mrf.mxu0
  %v770 = vadd.f32 0.0, %v769
  %v771 = vpop.f32.mrf.mxu0
  %772 = vdwg.mxu0
  %v773 = vadd.f32 %v736, %v770
  %v774 = vxor.u32 %v773, 2147483648
  %v775 = vmul.f32 %v774, 1.442695
  %v776 = vpow.pop %v775
  %v777 = vadd.f32 %v776, 1.0
  %v778 = vrcp.pop %v777
  %v779 = vmul.f32 %v777, %v778
  %v780 = vsub.f32 1.0, %v779
  %v781 = vmul.f32 %v778, %v780
  %v782 = vadd.f32 %v778, %v781
  %vm783 = vweird.f32 %v777
  %vm784 = vweird.f32 %v778
  %vm785 = vmor %vm783, %vm784
  %v786 = vsel %vm785, %v778, %v782
  %v787 = vand.u32 2147483647, %v777
  %vm788 = vcmp.eq.f32.partialorder %v787, 8.507059e+37
  %v789 = vand.u32 %v777, 2147483648
  %v790 = vor.u32 1.1754944e-38, %v789
  %v791 = vsel %vm788, %v790, %v786
  %v792 = vmul.f32 1.0, %v791
  %v793 = vtanh.pop %v773
  %795 = vrot.lane.b32.xlu0 %v640, 32
  %v796 = vpop.permute.xlu0 %795
  %v798 = vmul.f32 %v792, %v796
  %800 = vrot.lane.b32.xlu0 %v793, 64
  %v801 = vpop.permute.xlu0 %800
  %v803 = vmul.f32 %v792, %v801
  %805 = vrot.lane.b32.xlu0 %v803, 32
  %v806 = vpop.permute.xlu0 %805
  %v808 = vadd.f32 %v798, %v806
  %v809 = vtanh.pop %v808
  %811 = vrot.lane.b32.xlu0 %v809, 64
  %v812 = vpop.permute.xlu0 %811
  %v814 = vmul.f32 %v792, %v812
  %v815 = vpack.c.bf16 %v814, %v814
  %817 = vrot.lane.b32.xlu0 %v815, 32
  %v818 = vpop.permute.xlu0 %817
  %vm820 = vcmask 253952
  %821 = vst.msk [vmem:[#allocation3] sm:$0x1] %vm820, %v818
  %v822 = vunpack.c.l.b16 %v815
  %v823 = vpack.c.b16 %v822, %v822
  %824 = vrot.lane.b32.xlu0 %v823, 32
  %v825 = vpop.permute.xlu0 %824
  %v827 = vsel %vm619, %v825, 0
  %829 = vmatpush.bf16.msra.mxu0 0
  %830 = vmatpush.bf16.msra.mxu0 0
  %831 = vmatpush.bf16.msra.mxu0 0
  %832 = vmatpush.bf16.msra.mxu0 0
  %833 = vmatpush.bf16.msra.mxu0 0
  %834 = vmatpush.bf16.msra.mxu0 0
  %835 = vmatpush.bf16.msra.mxu0 %v754
  %836 = vmatpush.bf16.msra.mxu0 %v753
  %837 = vmatmul.bf16.gmra.mxu0 %v827
  %v838 = vpop.f32.mrf.mxu0
  %v839 = vadd.f32 0.0, %v838
  %v840 = vpop.f32.mrf.mxu0
  %841 = vdwg.mxu0
  %v843 = vrot.slane %v839, 6
  %v845 = vadd.f32 %v736, %v843
  %v846 = vxor.u32 %v845, 2147483648
  %v847 = vmul.f32 %v846, 1.442695
  %v848 = vpow.pop %v847
  %v849 = vadd.f32 %v848, 1.0
  %v850 = vrcp.pop %v849
  %v851 = vmul.f32 %v849, %v850
  %v852 = vsub.f32 1.0, %v851
  %v853 = vmul.f32 %v850, %v852
  %v854 = vadd.f32 %v850, %v853
  %vm855 = vweird.f32 %v849
  %vm856 = vweird.f32 %v850
  %vm857 = vmor %vm855, %vm856
  %v858 = vsel %vm857, %v850, %v854
  %v859 = vand.u32 2147483647, %v849
  %vm860 = vcmp.eq.f32.partialorder %v859, 8.507059e+37
  %v861 = vand.u32 %v849, 2147483648
  %v862 = vor.u32 1.1754944e-38, %v861
  %v863 = vsel %vm860, %v862, %v858
  %v864 = vmul.f32 1.0, %v863
  %v865 = vtanh.pop %v845
  %v867 = vrot.slane %v808, 6
  %v869 = vmul.f32 %v864, %v867
  %871 = vrot.lane.b32.xlu0 %v865, 64
  %v872 = vpop.permute.xlu0 %871
  %v874 = vmul.f32 %v864, %v872
  %876 = vrot.lane.b32.xlu0 %v874, 32
  %v877 = vpop.permute.xlu0 %876
  %v879 = vadd.f32 %v869, %v877
  %v880 = vtanh.pop %v879
  %882 = vrot.lane.b32.xlu0 %v880, 64
  %v883 = vpop.permute.xlu0 %882
  %v885 = vmul.f32 %v864, %v883
  %v886 = vpack.c.bf16 %v885, %v885
  %888 = vrot.lane.b32.xlu0 %v886, 32
  %v889 = vpop.permute.xlu0 %888
  %vm891 = vcmask 254977
  %892 = vst.msk [vmem:[#allocation3] sm:$0x2] %vm891, %v889
  %v893 = vunpack.c.l.b16 %v886
  %v894 = vpack.c.b16 %v893, %v893
  %v895 = vrot.slane %v894, 1
  %896 = vrot.lane.b32.xlu0 %v895, 32
  %v897 = vpop.permute.xlu0 %896
  %v899 = vsel %vm619, %v897, 0
  %901 = vmatpush.bf16.msra.mxu0 0
  %902 = vmatpush.bf16.msra.mxu0 0
  %903 = vmatpush.bf16.msra.mxu0 0
  %904 = vmatpush.bf16.msra.mxu0 0
  %905 = vmatpush.bf16.msra.mxu0 0
  %906 = vmatpush.bf16.msra.mxu0 0
  %907 = vmatpush.bf16.msra.mxu0 %v754
  %908 = vmatpush.bf16.msra.mxu0 %v753
  %909 = vmatmul.bf16.gmra.mxu0 %v899
  %v910 = vpop.f32.mrf.mxu0
  %v911 = vadd.f32 0.0, %v910
  %v912 = vpop.f32.mrf.mxu0
  %913 = vdwg.mxu0
  %v915 = vrot.slane %v911, 4
  %v917 = vadd.f32 %v736, %v915
  %v918 = vxor.u32 %v917, 2147483648
  %v919 = vmul.f32 %v918, 1.442695
  %v920 = vpow.pop %v919
  %v921 = vadd.f32 %v920, 1.0
  %v922 = vrcp.pop %v921
  %v923 = vmul.f32 %v921, %v922
  %v924 = vsub.f32 1.0, %v923
  %v925 = vmul.f32 %v922, %v924
  %v926 = vadd.f32 %v922, %v925
  %vm927 = vweird.f32 %v921
  %vm928 = vweird.f32 %v922
  %vm929 = vmor %vm927, %vm928
  %v930 = vsel %vm929, %v922, %v926
  %v931 = vand.u32 2147483647, %v921
  %vm932 = vcmp.eq.f32.partialorder %v931, 8.507059e+37
  %v933 = vand.u32 %v921, 2147483648
  %v934 = vor.u32 1.1754944e-38, %v933
  %v935 = vsel %vm932, %v934, %v930
  %v936 = vmul.f32 1.0, %v935
  %v937 = vtanh.pop %v917
  %v939 = vrot.slane %v879, 6
  %v941 = vmul.f32 %v936, %v939
  %943 = vrot.lane.b32.xlu0 %v937, 64
  %v944 = vpop.permute.xlu0 %943
  %v946 = vmul.f32 %v936, %v944
  %948 = vrot.lane.b32.xlu0 %v946, 32
  %v949 = vpop.permute.xlu0 %948
  %v951 = vadd.f32 %v941, %v949
  %v952 = vtanh.pop %v951
  %954 = vrot.lane.b32.xlu0 %v952, 64
  %v955 = vpop.permute.xlu0 %954
  %v957 = vmul.f32 %v936, %v955
  %v958 = vpack.c.bf16 %v957, %v957
  %960 = vrot.lane.b32.xlu0 %v958, 32
  %v961 = vpop.permute.xlu0 %960
  %vm963 = vcmask 256002
  %964 = vst.msk [vmem:[#allocation3] sm:$0x4] %vm963, %v961
  %v965 = vunpack.c.l.b16 %v958
  %v966 = vpack.c.b16 %v965, %v965
  %v967 = vrot.slane %v966, 2
  %968 = vrot.lane.b32.xlu0 %v967, 32
  %v969 = vpop.permute.xlu0 %968
  %v971 = vsel %vm619, %v969, 0
  %973 = vmatpush.bf16.msra.mxu0 0
  %974 = vmatpush.bf16.msra.mxu0 0
  %975 = vmatpush.bf16.msra.mxu0 0
  %976 = vmatpush.bf16.msra.mxu0 0
  %977 = vmatpush.bf16.msra.mxu0 0
  %978 = vmatpush.bf16.msra.mxu0 0
  %979 = vmatpush.bf16.msra.mxu0 %v754
  %980 = vmatpush.bf16.msra.mxu0 %v753
  %981 = vmatmul.bf16.gmra.mxu0 %v971
  %v982 = vpop.f32.mrf.mxu0
  %v983 = vadd.f32 0.0, %v982
  %v984 = vpop.f32.mrf.mxu0
  %985 = vdwg.mxu0
  %v987 = vrot.slane %v983, 2
  %v989 = vadd.f32 %v736, %v987
  %v990 = vxor.u32 %v989, 2147483648
  %v991 = vmul.f32 %v990, 1.442695
  %v992 = vpow.pop %v991
  %v993 = vadd.f32 %v992, 1.0
  %v994 = vrcp.pop %v993
  %v995 = vmul.f32 %v993, %v994
  %v996 = vsub.f32 1.0, %v995
  %v997 = vmul.f32 %v994, %v996
  %v998 = vadd.f32 %v994, %v997
  %vm999 = vweird.f32 %v993
  %vm1000 = vweird.f32 %v994
  %vm1001 = vmor %vm999, %vm1000
  %v1002 = vsel %vm1001, %v994, %v998
  %v1003 = vand.u32 2147483647, %v993
  %vm1004 = vcmp.eq.f32.partialorder %v1003, 8.507059e+37
  %v1005 = vand.u32 %v993, 2147483648
  %v1006 = vor.u32 1.1754944e-38, %v1005
  %v1007 = vsel %vm1004, %v1006, %v1002
  %v1008 = vmul.f32 1.0, %v1007
  %v1009 = vtanh.pop %v989
  %v1011 = vrot.slane %v951, 6
  %v1013 = vmul.f32 %v1008, %v1011
  %1015 = vrot.lane.b32.xlu0 %v1009, 64
  %v1016 = vpop.permute.xlu0 %1015
  %v1018 = vmul.f32 %v1008, %v1016
  %1020 = vrot.lane.b32.xlu0 %v1018, 32
  %v1021 = vpop.permute.xlu0 %1020
  %v1023 = vadd.f32 %v1013, %v1021
  %v1024 = vtanh.pop %v1023
  %1026 = vrot.lane.b32.xlu0 %v1024, 64
  %v1027 = vpop.permute.xlu0 %1026
  %v1029 = vmul.f32 %v1008, %v1027
  %v1030 = vpack.c.bf16 %v1029, %v1029
  %1032 = vrot.lane.b32.xlu0 %v1030, 32
  %v1033 = vpop.permute.xlu0 %1032
  %vm1035 = vcmask 257027
  %1036 = vst.msk [vmem:[#allocation3] sm:$0x8] %vm1035, %v1033
  %v1037 = vunpack.c.l.b16 %v1030
  %v1038 = vpack.c.b16 %v1037, %v1037
  %v1039 = vrot.slane %v1038, 3
  %1040 = vrot.lane.b32.xlu0 %v1039, 32
  %v1041 = vpop.permute.xlu0 %1040
  %v1043 = vsel %vm619, %v1041, 0
  %1045 = vmatpush.bf16.msra.mxu0 0
  %1046 = vmatpush.bf16.msra.mxu0 0
  %1047 = vmatpush.bf16.msra.mxu0 0
  %1048 = vmatpush.bf16.msra.mxu0 0
  %1049 = vmatpush.bf16.msra.mxu0 0
  %1050 = vmatpush.bf16.msra.mxu0 0
  %1051 = vmatpush.bf16.msra.mxu0 %v754
  %1052 = vmatpush.bf16.msra.mxu0 %v753
  %1053 = vmatmul.bf16.gmra.mxu0 %v1043
  %v1054 = vpop.f32.mrf.mxu0
  %v1055 = vadd.f32 0.0, %v1054
  %v1056 = vpop.f32.mrf.mxu0
  %1057 = vdwg.mxu0
  %v1058 = vadd.f32 %v738, %v1055
  %v1059 = vxor.u32 %v1058, 2147483648
  %v1060 = vmul.f32 %v1059, 1.442695
  %v1061 = vpow.pop %v1060
  %v1062 = vadd.f32 %v1061, 1.0
  %v1063 = vrcp.pop %v1062
  %v1064 = vmul.f32 %v1062, %v1063
  %v1065 = vsub.f32 1.0, %v1064
  %v1066 = vmul.f32 %v1063, %v1065
  %v1067 = vadd.f32 %v1063, %v1066
  %vm1068 = vweird.f32 %v1062
  %vm1069 = vweird.f32 %v1063
  %vm1070 = vmor %vm1068, %vm1069
  %v1071 = vsel %vm1070, %v1063, %v1067
  %v1072 = vand.u32 2147483647, %v1062
  %vm1073 = vcmp.eq.f32.partialorder %v1072, 8.507059e+37
  %v1074 = vand.u32 %v1062, 2147483648
  %v1075 = vor.u32 1.1754944e-38, %v1074
  %v1076 = vsel %vm1073, %v1075, %v1071
  %v1077 = vmul.f32 1.0, %v1076
  %v1078 = vtanh.pop %v1058
  %v1080 = vrot.slane %v1023, 6
  %v1082 = vmul.f32 %v1077, %v1080
  %1084 = vrot.lane.b32.xlu0 %v1078, 64
  %v1085 = vpop.permute.xlu0 %1084
  %v1087 = vmul.f32 %v1077, %v1085
  %1089 = vrot.lane.b32.xlu0 %v1087, 32
  %v1090 = vpop.permute.xlu0 %1089
  %v1092 = vadd.f32 %v1082, %v1090
  %v1093 = vtanh.pop %v1092
  %1095 = vrot.lane.b32.xlu0 %v1093, 64
  %v1096 = vpop.permute.xlu0 %1095
  %v1098 = vmul.f32 %v1077, %v1096
  %v1099 = vpack.c.bf16 %v1098, %v1098
  %1101 = vrot.lane.b32.xlu0 %v1099, 32
  %v1102 = vpop.permute.xlu0 %1101
  %1104 = vst.msk [vmem:[#allocation3 + $0x4] sm:$0x1] %vm820, %v1102
  %v1105 = vunpack.c.l.b16 %v1099
  %v1106 = vpack.c.b16 %v1105, %v1105
  %1107 = vrot.lane.b32.xlu0 %v1106, 32
  %v1108 = vpop.permute.xlu0 %1107
  %v1110 = vsel %vm619, %v1108, 0
  %1112 = vmatpush.bf16.msra.mxu0 0
  %1113 = vmatpush.bf16.msra.mxu0 0
  %1114 = vmatpush.bf16.msra.mxu0 0
  %1115 = vmatpush.bf16.msra.mxu0 0
  %1116 = vmatpush.bf16.msra.mxu0 0
  %1117 = vmatpush.bf16.msra.mxu0 0
  %1118 = vmatpush.bf16.msra.mxu0 %v754
  %1119 = vmatpush.bf16.msra.mxu0 %v753
  %1120 = vmatmul.bf16.gmra.mxu0 %v1110
  %v1121 = vpop.f32.mrf.mxu0
  %v1122 = vadd.f32 0.0, %v1121
  %v1123 = vpop.f32.mrf.mxu0
  %1124 = vdwg.mxu0
  %v1126 = vrot.slane %v1122, 6
  %v1128 = vadd.f32 %v738, %v1126
  %v1129 = vxor.u32 %v1128, 2147483648
  %v1130 = vmul.f32 %v1129, 1.442695
  %v1131 = vpow.pop %v1130
  %v1132 = vadd.f32 %v1131, 1.0
  %v1133 = vrcp.pop %v1132
  %v1134 = vmul.f32 %v1132, %v1133
  %v1135 = vsub.f32 1.0, %v1134
  %v1136 = vmul.f32 %v1133, %v1135
  %v1137 = vadd.f32 %v1133, %v1136
  %vm1138 = vweird.f32 %v1132
  %vm1139 = vweird.f32 %v1133
  %vm1140 = vmor %vm1138, %vm1139
  %v1141 = vsel %vm1140, %v1133, %v1137
  %v1142 = vand.u32 2147483647, %v1132
  %vm1143 = vcmp.eq.f32.partialorder %v1142, 8.507059e+37
  %v1144 = vand.u32 %v1132, 2147483648
  %v1145 = vor.u32 1.1754944e-38, %v1144
  %v1146 = vsel %vm1143, %v1145, %v1141
  %v1147 = vmul.f32 1.0, %v1146
  %v1148 = vtanh.pop %v1128
  %v1150 = vrot.slane %v1092, 6
  %v1152 = vmul.f32 %v1147, %v1150
  %1154 = vrot.lane.b32.xlu0 %v1148, 64
  %v1155 = vpop.permute.xlu0 %1154
  %v1157 = vmul.f32 %v1147, %v1155
  %1159 = vrot.lane.b32.xlu0 %v1157, 32
  %v1160 = vpop.permute.xlu0 %1159
  %v1162 = vadd.f32 %v1152, %v1160
  %v1163 = vtanh.pop %v1162
  %1165 = vrot.lane.b32.xlu0 %v1163, 64
  %v1166 = vpop.permute.xlu0 %1165
  %v1168 = vmul.f32 %v1147, %v1166
  %v1169 = vpack.c.bf16 %v1168, %v1168
  %1171 = vrot.lane.b32.xlu0 %v1169, 32
  %v1172 = vpop.permute.xlu0 %1171
  %1174 = vst.msk [vmem:[#allocation3 + $0x4] sm:$0x2] %vm891, %v1172
  %v1175 = vunpack.c.l.b16 %v1169
  %v1176 = vpack.c.b16 %v1175, %v1175
  %v1177 = vrot.slane %v1176, 1
  %1178 = vrot.lane.b32.xlu0 %v1177, 32
  %v1179 = vpop.permute.xlu0 %1178
  %v1181 = vsel %vm619, %v1179, 0
  %1183 = vmatpush.bf16.msra.mxu0 0
  %1184 = vmatpush.bf16.msra.mxu0 0
  %1185 = vmatpush.bf16.msra.mxu0 0
  %1186 = vmatpush.bf16.msra.mxu0 0
  %1187 = vmatpush.bf16.msra.mxu0 0
  %1188 = vmatpush.bf16.msra.mxu0 0
  %1189 = vmatpush.bf16.msra.mxu0 %v754
  %1190 = vmatpush.bf16.msra.mxu0 %v753
  %1191 = vmatmul.bf16.gmra.mxu0 %v1181
  %v1192 = vpop.f32.mrf.mxu0
  %v1193 = vadd.f32 0.0, %v1192
  %v1194 = vpop.f32.mrf.mxu0
  %1195 = vdwg.mxu0
  %v1197 = vrot.slane %v1193, 4
  %v1199 = vadd.f32 %v738, %v1197
  %v1200 = vxor.u32 %v1199, 2147483648
  %v1201 = vmul.f32 %v1200, 1.442695
  %v1202 = vpow.pop %v1201
  %v1203 = vadd.f32 %v1202, 1.0
  %v1204 = vrcp.pop %v1203
  %v1205 = vmul.f32 %v1203, %v1204
  %v1206 = vsub.f32 1.0, %v1205
  %v1207 = vmul.f32 %v1204, %v1206
  %v1208 = vadd.f32 %v1204, %v1207
  %vm1209 = vweird.f32 %v1203
  %vm1210 = vweird.f32 %v1204
  %vm1211 = vmor %vm1209, %vm1210
  %v1212 = vsel %vm1211, %v1204, %v1208
  %v1213 = vand.u32 2147483647, %v1203
  %vm1214 = vcmp.eq.f32.partialorder %v1213, 8.507059e+37
  %v1215 = vand.u32 %v1203, 2147483648
  %v1216 = vor.u32 1.1754944e-38, %v1215
  %v1217 = vsel %vm1214, %v1216, %v1212
  %v1218 = vmul.f32 1.0, %v1217
  %v1219 = vtanh.pop %v1199
  %v1221 = vrot.slane %v1162, 6
  %v1223 = vmul.f32 %v1218, %v1221
  %1225 = vrot.lane.b32.xlu0 %v1219, 64
  %v1226 = vpop.permute.xlu0 %1225
  %v1228 = vmul.f32 %v1218, %v1226
  %1230 = vrot.lane.b32.xlu0 %v1228, 32
  %v1231 = vpop.permute.xlu0 %1230
  %v1233 = vadd.f32 %v1223, %v1231
  %v1234 = vtanh.pop %v1233
  %1236 = vrot.lane.b32.xlu0 %v1234, 64
  %v1237 = vpop.permute.xlu0 %1236
  %v1239 = vmul.f32 %v1218, %v1237
  %v1240 = vpack.c.bf16 %v1239, %v1239
  %1242 = vrot.lane.b32.xlu0 %v1240, 32
  %v1243 = vpop.permute.xlu0 %1242
  %1245 = vst.msk [vmem:[#allocation3 + $0x4] sm:$0x4] %vm963, %v1243
  %v1246 = vld [vmem:[#allocation3] sm:$0xf]
  %v1247 = vld [vmem:[#allocation3 + $0x4] sm:$0x7]
  %v1248 = vld [vmem:[%s13] sm:$0xf]
  %v1249 = vld [vmem:[%s13 + $0x4] sm:$0xf]
  %v1250 = vld [vmem:[%s13 + $0x8] sm:$0xf]
  %v1251 = vld [vmem:[%s13 + $0xc] sm:$0xf]
  %v1252 = vld [vmem:[%s14] sm:$0x1]
  %v1254 = vperm.slane %v1252, 0
  %v1258 = vunpack.c.l.b16 %v1246
  %v1259 = vunpack.c.l.b16 %v1247
  %v1260 = vpack.c.b16 %v1259, %v1258
  %v1265 = vunpack.c.l.b16 %v1248
  %v1266 = vunpack.c.l.b16 %v1249
  %v1267 = vunpack.c.l.b16 %v1250
  %v1268 = vunpack.c.l.b16 %v1251
  %v1269 = vpack.c.b16 %v1266, %v1265
  %v1270 = vpack.c.b16 %v1268, %v1267
  %v1274 = vsel %vm619, %v1260, 0
  %1276 = vmatpush.bf16.msra.mxu0 0
  %1277 = vmatpush.bf16.msra.mxu0 0
  %1278 = vmatpush.bf16.msra.mxu0 0
  %1279 = vmatpush.bf16.msra.mxu0 0
  %1280 = vmatpush.bf16.msra.mxu0 0
  %1281 = vmatpush.bf16.msra.mxu0 0
  %1282 = vmatpush.bf16.msra.mxu0 %v1270
  %1283 = vmatpush.bf16.msra.mxu0 %v1269
  %1284 = vmatmul.bf16.gmra.mxu0 %v1274
  %v1285 = vpop.f32.mrf.mxu0
  %v1286 = vadd.f32 %v1254, %v1285
  %v1287 = vpop.f32.mrf.mxu0
  %v1288 = vadd.f32 %v1254, %v1287
  %1289 = vdwg.mxu0
  %1290 = vst [vmem:[%s15] sm:$0xff] %v1286
  %1291 = vst [vmem:[%s15 + $0x8] sm:$0x3f] %v1288
  // Predicated region
  $region62: #{caption_generator_receiver_forward.1} parent=0 // pred_check
    _
  $region63: #{caption_generator_receiver_forward.1} parent=0 // pred_check_branch
    %1293 = sbr.rel (0) target = $region65
  $region64: #{caption_generator_receiver_forward.1} parent=0 // pred_region
    _
  $region65: #{caption_generator_receiver_forward.1} parent=0 // pred_fallthru
    _
  // Predicated region
  $region66: #{caption_generator_receiver_forward.1} parent=0 // pred_check
    _
  $region67: #{caption_generator_receiver_forward.1} parent=0 // pred_check_branch
    %1295 = sbr.rel (0) target = $region69
  $region68: #{caption_generator_receiver_forward.1} parent=0 // pred_region
    _
  $region69: #{caption_generator_receiver_forward.1} parent=0 // pred_fallthru
    _

</llo_original>
